<compile_context>
chip_gen: v7x
topology: tpu7x:2x2x1
jax: 0.10.0
libtpu: 0.0.40
codegen_flags: <defaults>
</compile_context>

<pallas_src>
import jax
import jax.numpy as jnp
from jax.experimental import pallas as pl
from jax.experimental.pallas import tpu as pltpu

LANE = 128   # TPU lane width
SUB = 8      # TPU sublane width


def _rup(n, m):
    return ((n + m - 1) // m) * m


# ----------------------------------------------------------------------------
# Kernels
# ----------------------------------------------------------------------------
def _mlp_branches(x, ew1, eb1, ew2, eb2, pw1, pb1, pw2, pb2,
                  rw1, rb1, rw2, rb2, rw3, rb3):
    f32 = jnp.float32
    # env_feature_extractor: Linear(128) -> ReLU -> Linear(64)
    h = jnp.maximum(jnp.dot(x, ew1, preferred_element_type=f32) + eb1, 0.0)
    env = jnp.dot(h, ew2, preferred_element_type=f32) + eb2
    # dynamic_prompt_generator: Linear(128) -> ReLU -> Linear(state_dim)
    g = jnp.maximum(jnp.dot(env, pw1, preferred_element_type=f32) + pb1, 0.0)
    prompt = jnp.dot(g, pw2, preferred_element_type=f32) + pb2
    # rapid_adaptation_net: Linear(256) -> ReLU -> Linear(128) -> ReLU -> Linear(H)
    a = jnp.maximum(jnp.dot(x, rw1, preferred_element_type=f32) + rb1, 0.0)
    a = jnp.maximum(jnp.dot(a, rw2, preferred_element_type=f32) + rb2, 0.0)
    adapted = jnp.dot(a, rw3, preferred_element_type=f32) + rb3
    return env, prompt, adapted


def fused_kernel(x_ref, low_ref,
                 ew1, eb1, ew2, eb2, pw1, pb1, pw2, pb2,
                 rw1, rb1, rw2, rb2, rw3, rb3,
                 mw1, mb1,
                 env_ref, prompt_ref, adapt_ref, pred_mid_ref):
    """All branches + low_to_mid prediction head, fused in one kernel."""
    env, prompt, adapted = _mlp_branches(
        x_ref[...],
        ew1[...], eb1[...], ew2[...], eb2[...],
        pw1[...], pb1[...], pw2[...], pb2[...],
        rw1[...], rb1[...], rw2[...], rb2[...], rw3[...], rb3[...])
    env_ref[...] = env
    prompt_ref[...] = prompt
    adapt_ref[...] = adapted

    # Trajectory head is batch-independent: compute once (grid step 0).
    # TODO(synk): HPCRPredictionHead is not defined in the reference source;
    # implemented as Linear(in, out) with the 1/temperature scale folded into
    # mw1/mb1 at parameter-construction time.
    @pl.when(pl.program_id(0) == 0)
    def _():
        emb = jnp.mean(low_ref[...], axis=0, keepdims=True)            # (1, Dp)
        pred_mid_ref[...] = (
            jnp.dot(emb, mw1[...], preferred_element_type=jnp.float32) + mb1[...])


def fused_kernel_nohead(x_ref,
                        ew1, eb1, ew2, eb2, pw1, pb1, pw2, pb2,
                        rw1, rb1, rw2, rb2, rw3, rb3,
                        env_ref, prompt_ref, adapt_ref):
    """Variant used when len(trajectory) < 10 (no prediction head)."""
    env, prompt, adapted = _mlp_branches(
        x_ref[...],
        ew1[...], eb1[...], ew2[...], eb2[...],
        pw1[...], pb1[...], pw2[...], pb2[...],
        rw1[...], rb1[...], rw2[...], rb2[...], rw3[...], rb3[...])
    env_ref[...] = env
    prompt_ref[...] = prompt
    adapt_ref[...] = adapted


def pred_head_kernel(seg_ref, w, b, o_ref):
    """Standalone mid_to_high head (rarely-taken T>=50 path)."""
    emb = jnp.mean(seg_ref[...], axis=0, keepdims=True)
    o_ref[...] = jnp.dot(emb, w[...], preferred_element_type=jnp.float32) + b[...]


# ----------------------------------------------------------------------------
# Parameters (deterministic, synthetic)
# ----------------------------------------------------------------------------
def _linear_params(key, in_dim, out_dim):
    kw, kb = jax.random.split(key)
    w = jax.random.normal(kw, (in_dim, out_dim), jnp.float32) / jnp.sqrt(in_dim)
    b = 0.01 * jax.random.normal(kb, (1, out_dim), jnp.float32)
    return w, b


def init_params(key, state_dim, hidden_dim):
    keys = jax.random.split(key, 9)
    p = {}
    # rapid_adaptation_net
    p["rw1"], p["rb1"] = _linear_params(keys[0], state_dim, 256)
    p["rw2"], p["rb2"] = _linear_params(keys[1], 256, 128)
    p["rw3"], p["rb3"] = _linear_params(keys[2], 128, hidden_dim)
    # env_feature_extractor
    p["ew1"], p["eb1"] = _linear_params(keys[3], state_dim, 128)
    p["ew2"], p["eb2"] = _linear_params(keys[4], 128, 64)
    # dynamic_prompt_generator
    p["pw1"], p["pb1"] = _linear_params(keys[5], 64, 128)
    p["pw2"], p["pb2"] = _linear_params(keys[6], 128, state_dim)
    # meta prediction heads
    p["mw1"], p["mb1"] = _linear_params(keys[7], hidden_dim, hidden_dim * 2)      # low_to_mid
    p["mw2"], p["mb2"] = _linear_params(keys[8], hidden_dim * 2, hidden_dim * 4)  # mid_to_high
    return p


def pad_params(p, state_dim, hidden_dim):
    """Zero-pad every weight/bias to 128-lane-dense shapes; fold temperature."""
    Dp = _rup(state_dim, LANE)
    Hp = _rup(hidden_dim, LANE)
    E2p = _rup(64, LANE)
    H2p = _rup(hidden_dim * 2, LANE)
    H4p = _rup(hidden_dim * 4, LANE)

    def padw(w, r, c):
        return jnp.pad(w, ((0, r - w.shape[0]), (0, c - w.shape[1])))

    q = {}
    q["ew1"] = padw(p["ew1"], Dp, 128);  q["eb1"] = padw(p["eb1"], 1, 128)
    q["ew2"] = padw(p["ew2"], 128, E2p); q["eb2"] = padw(p["eb2"], 1, E2p)
    q["pw1"] = padw(p["pw1"], E2p, 128); q["pb1"] = padw(p["pb1"], 1, 128)
    q["pw2"] = padw(p["pw2"], 128, Dp);  q["pb2"] = padw(p["pb2"], 1, Dp)
    q["rw1"] = padw(p["rw1"], Dp, 256);  q["rb1"] = padw(p["rb1"], 1, 256)
    q["rw2"] = padw(p["rw2"], 256, 128); q["rb2"] = padw(p["rb2"], 1, 128)
    q["rw3"] = padw(p["rw3"], 128, Hp);  q["rb3"] = padw(p["rb3"], 1, Hp)
    # prediction heads: fold 1/temperature into weights & biases
    q["mw1"] = padw(p["mw1"] * (1.0 / 0.1), _rup(p["mw1"].shape[0], LANE), H2p)
    q["mb1"] = padw(p["mb1"] * (1.0 / 0.1), 1, H2p)
    q["mw2"] = padw(p["mw2"] * (1.0 / 0.15), _rup(p["mw2"].shape[0], LANE), H4p)
    q["mb2"] = padw(p["mb2"] * (1.0 / 0.15), 1, H4p)
    return q


# ----------------------------------------------------------------------------
# Forward pass (mirrors ZeroShotHPCR.forward)
# ----------------------------------------------------------------------------
_WEIGHT_ORDER = ["ew1", "eb1", "ew2", "eb2", "pw1", "pb1", "pw2", "pb2",
                 "rw1", "rb1", "rw2", "rb2", "rw3", "rb3"]


def _const_spec(a):
    nd = a.ndim
    return pl.BlockSpec(a.shape, lambda i, _n=nd: (0,) * _n)


def zero_shot_hpcr_forward(observation, trajectory_states, padded, state_dim, hidden_dim):
    """observation: (B, state_dim) f32; trajectory_states: (T, state_dim) f32."""
    B = observation.shape[0]
    Dp = _rup(state_dim, LANE)
    Hp = _rup(hidden_dim, LANE)
    E2p = _rup(64, LANE)
    H2p = _rup(hidden_dim * 2, LANE)
    H4p = _rup(hidden_dim * 4, LANE)

    # Batch tiling: tile of min(round-up-to-8(B), 128) rows, grid over batch.
    TB = min(_rup(B, SUB), 128)
    Bp = _rup(B, TB)
    x_p = jnp.pad(observation, ((0, Bp - B), (0, Dp - state_dim)))

    weights = [padded[n] for n in _WEIGHT_ORDER]
    batch_x_spec = pl.BlockSpec((TB, Dp), lambda i: (i, 0))
    env_spec = pl.BlockSpec((TB, E2p), lambda i: (i, 0))
    prompt_spec = pl.BlockSpec((TB, Dp), lambda i: (i, 0))
    adapt_spec = pl.BlockSpec((TB, Hp), lambda i: (i, 0))
    grid = (Bp // TB,)
    cparams = pltpu.CompilerParams(dimension_semantics=("arbitrary",))

    T = trajectory_states.shape[0]
    pred_mid = None
    pred_high = None

    if T >= 10:
        low_seg = trajectory_states[-10:]
        low_p = jnp.pad(low_seg, ((0, 0), (0, Dp - state_dim)))
        ins = [x_p, low_p] + weights + [padded["mw1"], padded["mb1"]]
        in_specs = ([batch_x_spec, _const_spec(low_p)]
                    + [_const_spec(w) for w in weights]
                    + [_const_spec(padded["mw1"]), _const_spec(padded["mb1"])])
        out_shape = (jax.ShapeDtypeStruct((Bp, E2p), jnp.float32),
                     jax.ShapeDtypeStruct((Bp, Dp), jnp.float32),
                     jax.ShapeDtypeStruct((Bp, Hp), jnp.float32),
                     jax.ShapeDtypeStruct((1, H2p), jnp.float32))
        out_specs = (env_spec, prompt_spec, adapt_spec,
                     pl.BlockSpec((1, H2p), lambda i: (0, 0)))
        env_p, prompt_p, adapt_p, pm_p = pl.pallas_call(
            fused_kernel, grid=grid,
            in_specs=in_specs, out_specs=out_specs, out_shape=out_shape,
            compiler_params=cparams)(*ins)
        pred_mid = pm_p[0, :hidden_dim * 2]

        if T >= 50:
            # TODO(synk): in the reference, mid_to_high expects hidden_dim*2
            # inputs but _encode_level yields state_dim features; that path is
            # internally inconsistent, so it is only taken when shapes allow.
            mid_seg = trajectory_states[-50:]
            if mid_seg.shape[1] == hidden_dim * 2:
                mid_p = jnp.pad(mid_seg, ((0, 0), (0, H2p - mid_seg.shape[1])))
                ph = pl.pallas_call(
                    pred_head_kernel, grid=(1,),
                    in_specs=[_const_spec(mid_p), _const_spec(padded["mw2"]),
                              _const_spec(padded["mb2"])],
                    out_specs=pl.BlockSpec((1, H4p), lambda i: (0, 0)),
                    out_shape=jax.ShapeDtypeStruct((1, H4p), jnp.float32),
                )(mid_p, padded["mw2"], padded["mb2"])
                pred_high = ph[0, :hidden_dim * 4]
    else:
        env_p, prompt_p, adapt_p = pl.pallas_call(
            fused_kernel_nohead, grid=grid,
            in_specs=[batch_x_spec] + [_const_spec(w) for w in weights],
            out_specs=(env_spec, prompt_spec, adapt_spec),
            out_shape=(jax.ShapeDtypeStruct((Bp, E2p), jnp.float32),
                       jax.ShapeDtypeStruct((Bp, Dp), jnp.float32),
                       jax.ShapeDtypeStruct((Bp, Hp), jnp.float32)),
            compiler_params=cparams)(x_p, *weights)

    return {
        "adapted_representation": adapt_p[:B, :hidden_dim],
        "dynamic_prompt": prompt_p[:B, :state_dim],
        "pred_mid": pred_mid,
        "pred_high": pred_high,
        "env_features": env_p[:B, :64],
    }


# ----------------------------------------------------------------------------
# Pure-JAX reference (correctness check)
# ----------------------------------------------------------------------------
def _ref_forward(obs, traj, p):
    relu = lambda t: jnp.maximum(t, 0.0)
    env = relu(obs @ p["ew1"] + p["eb1"]) @ p["ew2"] + p["eb2"]
    prompt = relu(env @ p["pw1"] + p["pb1"]) @ p["pw2"] + p["pb2"]
    h = relu(obs @ p["rw1"] + p["rb1"])
    h = relu(h @ p["rw2"] + p["rb2"])
    adapted = h @ p["rw3"] + p["rb3"]
    low_emb = jnp.mean(traj[-10:], axis=0, keepdims=True)
    pred_mid = ((low_emb @ p["mw1"] + p["mb1"]) / 0.1)[0]
    return env, prompt, adapted, pred_mid


# ----------------------------------------------------------------------------
if __name__ == "__main__":
    STATE_DIM = 32
    HIDDEN_DIM = 32   # state_dim == hidden_dim keeps low_to_mid head consistent
    B = 8
    T = 20            # >= 10 so pred_mid is computed; < 50 so pred_high is None

    key = jax.random.PRNGKey(0)
    k_param, k_obs, k_traj = jax.random.split(key, 3)

    params = init_params(k_param, STATE_DIM, HIDDEN_DIM)
    padded = pad_params(params, STATE_DIM, HIDDEN_DIM)
    observation = jax.random.normal(k_obs, (B, STATE_DIM), jnp.float32)
    trajectory_states = jax.random.normal(k_traj, (T, STATE_DIM), jnp.float32)

    out = zero_shot_hpcr_forward(observation, trajectory_states, padded,
                                 STATE_DIM, HIDDEN_DIM)
    jax.block_until_ready(out["adapted_representation"])
    jax.block_until_ready(out["dynamic_prompt"])
    jax.block_until_ready(out["env_features"])
    if out["pred_mid"] is not None:
        jax.block_until_ready(out["pred_mid"])

    # correctness check against a plain-JAX reference (unpadded params)
    env_r, prompt_r, adapted_r, pred_mid_r = _ref_forward(
        observation, trajectory_states, params)
    assert jnp.allclose(out["env_features"], env_r, atol=1e-4)
    assert jnp.allclose(out["dynamic_prompt"], prompt_r, atol=1e-4)
    assert jnp.allclose(out["adapted_representation"], adapted_r, atol=1e-4)
    assert jnp.allclose(out["pred_mid"], pred_mid_r, atol=1e-3)
    assert out["pred_high"] is None

    print("KERNEL_OK")
</pallas_src>

<mosaic_0001>
module attributes {stable_mosaic.version = 11 : i64} {
  func.func @fused_kernel(%arg0: i32, %arg1: memref<8x128xf32, #tpu.memory_space<vmem>>, %arg2: memref<10x128xf32, #tpu.memory_space<vmem>>, %arg3: memref<128x128xf32, #tpu.memory_space<vmem>>, %arg4: memref<1x128xf32, #tpu.memory_space<vmem>>, %arg5: memref<128x128xf32, #tpu.memory_space<vmem>>, %arg6: memref<1x128xf32, #tpu.memory_space<vmem>>, %arg7: memref<128x128xf32, #tpu.memory_space<vmem>>, %arg8: memref<1x128xf32, #tpu.memory_space<vmem>>, %arg9: memref<128x128xf32, #tpu.memory_space<vmem>>, %arg10: memref<1x128xf32, #tpu.memory_space<vmem>>, %arg11: memref<128x256xf32, #tpu.memory_space<vmem>>, %arg12: memref<1x256xf32, #tpu.memory_space<vmem>>, %arg13: memref<256x128xf32, #tpu.memory_space<vmem>>, %arg14: memref<1x128xf32, #tpu.memory_space<vmem>>, %arg15: memref<128x128xf32, #tpu.memory_space<vmem>>, %arg16: memref<1x128xf32, #tpu.memory_space<vmem>>, %arg17: memref<128x128xf32, #tpu.memory_space<vmem>>, %arg18: memref<1x128xf32, #tpu.memory_space<vmem>>, %arg19: memref<8x128xf32, #tpu.memory_space<vmem>>, %arg20: memref<8x128xf32, #tpu.memory_space<vmem>>, %arg21: memref<8x128xf32, #tpu.memory_space<vmem>>, %arg22: memref<1x128xf32, #tpu.memory_space<vmem>>) attributes {dimension_semantics = [#tpu.dimension_semantics<arbitrary>], iteration_bounds = array<i64: 1>, scalar_prefetch = 0 : i64, scratch_operands = 0 : i64, tpu.core_type = #tpu.core_type<tc>, window_params = [{transform_indices = @transform_0, window_bounds = array<i64: 8, 128>}, {pipeline_mode = #tpu.pipeline_mode<synchronous>, transform_indices = @transform_1, window_bounds = array<i64: 10, 128>}, {pipeline_mode = #tpu.pipeline_mode<synchronous>, transform_indices = @transform_2, window_bounds = array<i64: 128, 128>}, {pipeline_mode = #tpu.pipeline_mode<synchronous>, transform_indices = @transform_3, window_bounds = array<i64: 1, 128>}, {pipeline_mode = #tpu.pipeline_mode<synchronous>, transform_indices = @transform_4, window_bounds = array<i64: 128, 128>}, {pipeline_mode = #tpu.pipeline_mode<synchronous>, transform_indices = @transform_5, window_bounds = array<i64: 1, 128>}, {pipeline_mode = #tpu.pipeline_mode<synchronous>, transform_indices = @transform_6, window_bounds = array<i64: 128, 128>}, {pipeline_mode = #tpu.pipeline_mode<synchronous>, transform_indices = @transform_7, window_bounds = array<i64: 1, 128>}, {pipeline_mode = #tpu.pipeline_mode<synchronous>, transform_indices = @transform_8, window_bounds = array<i64: 128, 128>}, {pipeline_mode = #tpu.pipeline_mode<synchronous>, transform_indices = @transform_9, window_bounds = array<i64: 1, 128>}, {pipeline_mode = #tpu.pipeline_mode<synchronous>, transform_indices = @transform_10, window_bounds = array<i64: 128, 256>}, {pipeline_mode = #tpu.pipeline_mode<synchronous>, transform_indices = @transform_11, window_bounds = array<i64: 1, 256>}, {pipeline_mode = #tpu.pipeline_mode<synchronous>, transform_indices = @transform_12, window_bounds = array<i64: 256, 128>}, {pipeline_mode = #tpu.pipeline_mode<synchronous>, transform_indices = @transform_13, window_bounds = array<i64: 1, 128>}, {pipeline_mode = #tpu.pipeline_mode<synchronous>, transform_indices = @transform_14, window_bounds = array<i64: 128, 128>}, {pipeline_mode = #tpu.pipeline_mode<synchronous>, transform_indices = @transform_15, window_bounds = array<i64: 1, 128>}, {pipeline_mode = #tpu.pipeline_mode<synchronous>, transform_indices = @transform_16, window_bounds = array<i64: 128, 128>}, {pipeline_mode = #tpu.pipeline_mode<synchronous>, transform_indices = @transform_17, window_bounds = array<i64: 1, 128>}, {transform_indices = @transform_18, window_bounds = array<i64: 8, 128>}, {transform_indices = @transform_19, window_bounds = array<i64: 8, 128>}, {transform_indices = @transform_20, window_bounds = array<i64: 8, 128>}, {pipeline_mode = #tpu.pipeline_mode<synchronous>, transform_indices = @transform_21, window_bounds = array<i64: 1, 128>}]} {
    %c0 = arith.constant 0 : index
    %c0_0 = arith.constant 0 : index
    %0 = vector.load %arg1[%c0, %c0_0] : memref<8x128xf32, #tpu.memory_space<vmem>>, vector<8x128xf32>
    %c0_1 = arith.constant 0 : index
    %c0_2 = arith.constant 0 : index
    %1 = vector.load %arg3[%c0_1, %c0_2] : memref<128x128xf32, #tpu.memory_space<vmem>>, vector<128x128xf32>
    %c0_3 = arith.constant 0 : index
    %c0_4 = arith.constant 0 : index
    %2 = vector.load %arg4[%c0_3, %c0_4] : memref<1x128xf32, #tpu.memory_space<vmem>>, vector<1x128xf32>
    %c0_5 = arith.constant 0 : index
    %c0_6 = arith.constant 0 : index
    %3 = vector.load %arg5[%c0_5, %c0_6] : memref<128x128xf32, #tpu.memory_space<vmem>>, vector<128x128xf32>
    %c0_7 = arith.constant 0 : index
    %c0_8 = arith.constant 0 : index
    %4 = vector.load %arg6[%c0_7, %c0_8] : memref<1x128xf32, #tpu.memory_space<vmem>>, vector<1x128xf32>
    %c0_9 = arith.constant 0 : index
    %c0_10 = arith.constant 0 : index
    %5 = vector.load %arg7[%c0_9, %c0_10] : memref<128x128xf32, #tpu.memory_space<vmem>>, vector<128x128xf32>
    %c0_11 = arith.constant 0 : index
    %c0_12 = arith.constant 0 : index
    %6 = vector.load %arg8[%c0_11, %c0_12] : memref<1x128xf32, #tpu.memory_space<vmem>>, vector<1x128xf32>
    %c0_13 = arith.constant 0 : index
    %c0_14 = arith.constant 0 : index
    %7 = vector.load %arg9[%c0_13, %c0_14] : memref<128x128xf32, #tpu.memory_space<vmem>>, vector<128x128xf32>
    %c0_15 = arith.constant 0 : index
    %c0_16 = arith.constant 0 : index
    %8 = vector.load %arg10[%c0_15, %c0_16] : memref<1x128xf32, #tpu.memory_space<vmem>>, vector<1x128xf32>
    %c0_17 = arith.constant 0 : index
    %c0_18 = arith.constant 0 : index
    %9 = vector.load %arg11[%c0_17, %c0_18] : memref<128x256xf32, #tpu.memory_space<vmem>>, vector<128x256xf32>
    %c0_19 = arith.constant 0 : index
    %c0_20 = arith.constant 0 : index
    %10 = vector.load %arg12[%c0_19, %c0_20] : memref<1x256xf32, #tpu.memory_space<vmem>>, vector<1x256xf32>
    %c0_21 = arith.constant 0 : index
    %c0_22 = arith.constant 0 : index
    %11 = vector.load %arg13[%c0_21, %c0_22] : memref<256x128xf32, #tpu.memory_space<vmem>>, vector<256x128xf32>
    %c0_23 = arith.constant 0 : index
    %c0_24 = arith.constant 0 : index
    %12 = vector.load %arg14[%c0_23, %c0_24] : memref<1x128xf32, #tpu.memory_space<vmem>>, vector<1x128xf32>
    %c0_25 = arith.constant 0 : index
    %c0_26 = arith.constant 0 : index
    %13 = vector.load %arg15[%c0_25, %c0_26] : memref<128x128xf32, #tpu.memory_space<vmem>>, vector<128x128xf32>
    %c0_27 = arith.constant 0 : index
    %c0_28 = arith.constant 0 : index
    %14 = vector.load %arg16[%c0_27, %c0_28] : memref<1x128xf32, #tpu.memory_space<vmem>>, vector<1x128xf32>
    %cst = arith.constant dense<0.000000e+00> : vector<8x128xf32>
    %15 = tpu.matmul %0, %1, %cst {dimension_numbers = #tpu.dot_dimension_numbers<[1], [0], [0], [1], [0, 0, 1, 1], [], []>} : vector<8x128xf32>, vector<128x128xf32>, vector<8x128xf32> -> vector<8x128xf32>
    %16 = vector.broadcast %2 : vector<1x128xf32> to vector<8x128xf32>
    %17 = arith.addf %15, %16 : vector<8x128xf32>
    %cst_29 = arith.constant 0.000000e+00 : f32
    %18 = vector.broadcast %cst_29 : f32 to vector<8x128xf32>
    %19 = arith.maximumf %17, %18 : vector<8x128xf32>
    %cst_30 = arith.constant dense<0.000000e+00> : vector<8x128xf32>
    %20 = tpu.matmul %19, %3, %cst_30 {dimension_numbers = #tpu.dot_dimension_numbers<[1], [0], [0], [1], [0, 0, 1, 1], [], []>} : vector<8x128xf32>, vector<128x128xf32>, vector<8x128xf32> -> vector<8x128xf32>
    %21 = vector.broadcast %4 : vector<1x128xf32> to vector<8x128xf32>
    %22 = arith.addf %20, %21 : vector<8x128xf32>
    %cst_31 = arith.constant dense<0.000000e+00> : vector<8x128xf32>
    %23 = tpu.matmul %22, %5, %cst_31 {dimension_numbers = #tpu.dot_dimension_numbers<[1], [0], [0], [1], [0, 0, 1, 1], [], []>} : vector<8x128xf32>, vector<128x128xf32>, vector<8x128xf32> -> vector<8x128xf32>
    %24 = vector.broadcast %6 : vector<1x128xf32> to vector<8x128xf32>
    %25 = arith.addf %23, %24 : vector<8x128xf32>
    %cst_32 = arith.constant 0.000000e+00 : f32
    %26 = vector.broadcast %cst_32 : f32 to vector<8x128xf32>
    %27 = arith.maximumf %25, %26 : vector<8x128xf32>
    %cst_33 = arith.constant dense<0.000000e+00> : vector<8x128xf32>
    %28 = tpu.matmul %27, %7, %cst_33 {dimension_numbers = #tpu.dot_dimension_numbers<[1], [0], [0], [1], [0, 0, 1, 1], [], []>} : vector<8x128xf32>, vector<128x128xf32>, vector<8x128xf32> -> vector<8x128xf32>
    %29 = vector.broadcast %8 : vector<1x128xf32> to vector<8x128xf32>
    %30 = arith.addf %28, %29 : vector<8x128xf32>
    %cst_34 = arith.constant dense<0.000000e+00> : vector<8x256xf32>
    %31 = tpu.matmul %0, %9, %cst_34 {dimension_numbers = #tpu.dot_dimension_numbers<[1], [0], [0], [1], [0, 0, 1, 1], [], []>} : vector<8x128xf32>, vector<128x256xf32>, vector<8x256xf32> -> vector<8x256xf32>
    %32 = vector.broadcast %10 : vector<1x256xf32> to vector<8x256xf32>
    %33 = arith.addf %31, %32 : vector<8x256xf32>
    %cst_35 = arith.constant 0.000000e+00 : f32
    %34 = vector.broadcast %cst_35 : f32 to vector<8x256xf32>
    %35 = arith.maximumf %33, %34 : vector<8x256xf32>
    %cst_36 = arith.constant dense<0.000000e+00> : vector<8x128xf32>
    %36 = tpu.matmul %35, %11, %cst_36 {dimension_numbers = #tpu.dot_dimension_numbers<[1], [0], [0], [1], [0, 0, 1, 1], [], []>} : vector<8x256xf32>, vector<256x128xf32>, vector<8x128xf32> -> vector<8x128xf32>
    %37 = vector.broadcast %12 : vector<1x128xf32> to vector<8x128xf32>
    %38 = arith.addf %36, %37 : vector<8x128xf32>
    %cst_37 = arith.constant 0.000000e+00 : f32
    %39 = vector.broadcast %cst_37 : f32 to vector<8x128xf32>
    %40 = arith.maximumf %38, %39 : vector<8x128xf32>
    %cst_38 = arith.constant dense<0.000000e+00> : vector<8x128xf32>
    %41 = tpu.matmul %40, %13, %cst_38 {dimension_numbers = #tpu.dot_dimension_numbers<[1], [0], [0], [1], [0, 0, 1, 1], [], []>} : vector<8x128xf32>, vector<128x128xf32>, vector<8x128xf32> -> vector<8x128xf32>
    %42 = vector.broadcast %14 : vector<1x128xf32> to vector<8x128xf32>
    %43 = arith.addf %41, %42 : vector<8x128xf32>
    %c0_39 = arith.constant 0 : index
    %c0_40 = arith.constant 0 : index
    %44 = vector.load %arg19[%c0_39, %c0_40] : memref<8x128xf32, #tpu.memory_space<vmem>>, vector<8x128xf32>
    tpu.vector_store %arg19[%c0_39, %c0_40], %22 {strides = array<i32>} : memref<8x128xf32, #tpu.memory_space<vmem>>, vector<8x128xf32>,
    %c0_41 = arith.constant 0 : index
    %c0_42 = arith.constant 0 : index
    %45 = vector.load %arg20[%c0_41, %c0_42] : memref<8x128xf32, #tpu.memory_space<vmem>>, vector<8x128xf32>
    tpu.vector_store %arg20[%c0_41, %c0_42], %30 {strides = array<i32>} : memref<8x128xf32, #tpu.memory_space<vmem>>, vector<8x128xf32>,
    %c0_43 = arith.constant 0 : index
    %c0_44 = arith.constant 0 : index
    %46 = vector.load %arg21[%c0_43, %c0_44] : memref<8x128xf32, #tpu.memory_space<vmem>>, vector<8x128xf32>
    tpu.vector_store %arg21[%c0_43, %c0_44], %43 {strides = array<i32>} : memref<8x128xf32, #tpu.memory_space<vmem>>, vector<8x128xf32>,
    %c0_i32 = arith.constant 0 : i32
    %47 = arith.cmpi eq, %arg0, %c0_i32 : i32
    %48 = arith.extui %47 : i1 to i32
    %c0_i32_45 = arith.constant 0 : i32
    %49 = arith.cmpi ne, %48, %c0_i32_45 : i32
    scf.if %49 {
      %c0_46 = arith.constant 0 : index
      %c0_47 = arith.constant 0 : index
      %50 = vector.load %arg2[%c0_46, %c0_47] : memref<10x128xf32, #tpu.memory_space<vmem>>, vector<10x128xf32>
      %cst_48 = arith.constant dense<0.000000e+00> : vector<128xf32>
      %51 = vector.multi_reduction <add>, %50, %cst_48 [0] : vector<10x128xf32> to vector<128xf32>
      %52 = vector.shape_cast %51 : vector<128xf32> to vector<1x128xf32>
      %cst_49 = arith.constant 1.000000e+01 : f32
      %53 = vector.broadcast %cst_49 : f32 to vector<1x128xf32>
      %54 = arith.divf %52, %53 : vector<1x128xf32>
      %c0_50 = arith.constant 0 : index
      %c0_51 = arith.constant 0 : index
      %55 = vector.load %arg17[%c0_50, %c0_51] : memref<128x128xf32, #tpu.memory_space<vmem>>, vector<128x128xf32>
      %cst_52 = arith.constant dense<0.000000e+00> : vector<1x128xf32>
      %56 = tpu.matmul %54, %55, %cst_52 {dimension_numbers = #tpu.dot_dimension_numbers<[1], [0], [0], [1], [0, 0, 1, 1], [], []>} : vector<1x128xf32>, vector<128x128xf32>, vector<1x128xf32> -> vector<1x128xf32>
      %c0_53 = arith.constant 0 : index
      %c0_54 = arith.constant 0 : index
      %57 = vector.load %arg18[%c0_53, %c0_54] : memref<1x128xf32, #tpu.memory_space<vmem>>, vector<1x128xf32>
      %58 = arith.addf %56, %57 : vector<1x128xf32>
      %c0_55 = arith.constant 0 : index
      %c0_56 = arith.constant 0 : index
      %59 = vector.load %arg22[%c0_55, %c0_56] : memref<1x128xf32, #tpu.memory_space<vmem>>, vector<1x128xf32>
      tpu.vector_store %arg22[%c0_55, %c0_56], %58 {strides = array<i32>} : memref<1x128xf32, #tpu.memory_space<vmem>>, vector<1x128xf32>,
    } else {
    }
    return
  }
  func.func @transform_0(%arg0: i32) -> (i32, i32) {
    %c0_i32 = arith.constant 0 : i32
    %c0_i32_0 = arith.constant 0 : i32
    return %arg0, %c0_i32 : i32, i32
  }
  func.func @transform_1(%arg0: i32) -> (i32, i32) {
    %c0_i32 = arith.constant 0 : i32
    %c0_i32_0 = arith.constant 0 : i32
    %c0_i32_1 = arith.constant 0 : i32
    return %c0_i32, %c0_i32_0 : i32, i32
  }
  func.func @transform_2(%arg0: i32) -> (i32, i32) {
    %c0_i32 = arith.constant 0 : i32
    %c0_i32_0 = arith.constant 0 : i32
    %c0_i32_1 = arith.constant 0 : i32
    return %c0_i32, %c0_i32_0 : i32, i32
  }
  func.func @transform_3(%arg0: i32) -> (i32, i32) {
    %c0_i32 = arith.constant 0 : i32
    %c0_i32_0 = arith.constant 0 : i32
    %c0_i32_1 = arith.constant 0 : i32
    return %c0_i32, %c0_i32_0 : i32, i32
  }
  func.func @transform_4(%arg0: i32) -> (i32, i32) {
    %c0_i32 = arith.constant 0 : i32
    %c0_i32_0 = arith.constant 0 : i32
    %c0_i32_1 = arith.constant 0 : i32
    return %c0_i32, %c0_i32_0 : i32, i32
  }
  func.func @transform_5(%arg0: i32) -> (i32, i32) {
    %c0_i32 = arith.constant 0 : i32
    %c0_i32_0 = arith.constant 0 : i32
    %c0_i32_1 = arith.constant 0 : i32
    return %c0_i32, %c0_i32_0 : i32, i32
  }
  func.func @transform_6(%arg0: i32) -> (i32, i32) {
    %c0_i32 = arith.constant 0 : i32
    %c0_i32_0 = arith.constant 0 : i32
    %c0_i32_1 = arith.constant 0 : i32
    return %c0_i32, %c0_i32_0 : i32, i32
  }
  func.func @transform_7(%arg0: i32) -> (i32, i32) {
    %c0_i32 = arith.constant 0 : i32
    %c0_i32_0 = arith.constant 0 : i32
    %c0_i32_1 = arith.constant 0 : i32
    return %c0_i32, %c0_i32_0 : i32, i32
  }
  func.func @transform_8(%arg0: i32) -> (i32, i32) {
    %c0_i32 = arith.constant 0 : i32
    %c0_i32_0 = arith.constant 0 : i32
    %c0_i32_1 = arith.constant 0 : i32
    return %c0_i32, %c0_i32_0 : i32, i32
  }
  func.func @transform_9(%arg0: i32) -> (i32, i32) {
    %c0_i32 = arith.constant 0 : i32
    %c0_i32_0 = arith.constant 0 : i32
    %c0_i32_1 = arith.constant 0 : i32
    return %c0_i32, %c0_i32_0 : i32, i32
  }
  func.func @transform_10(%arg0: i32) -> (i32, i32) {
    %c0_i32 = arith.constant 0 : i32
    %c0_i32_0 = arith.constant 0 : i32
    %c0_i32_1 = arith.constant 0 : i32
    return %c0_i32, %c0_i32_0 : i32, i32
  }
  func.func @transform_11(%arg0: i32) -> (i32, i32) {
    %c0_i32 = arith.constant 0 : i32
    %c0_i32_0 = arith.constant 0 : i32
    %c0_i32_1 = arith.constant 0 : i32
    return %c0_i32, %c0_i32_0 : i32, i32
  }
  func.func @transform_12(%arg0: i32) -> (i32, i32) {
    %c0_i32 = arith.constant 0 : i32
    %c0_i32_0 = arith.constant 0 : i32
    %c0_i32_1 = arith.constant 0 : i32
    return %c0_i32, %c0_i32_0 : i32, i32
  }
  func.func @transform_13(%arg0: i32) -> (i32, i32) {
    %c0_i32 = arith.constant 0 : i32
    %c0_i32_0 = arith.constant 0 : i32
    %c0_i32_1 = arith.constant 0 : i32
    return %c0_i32, %c0_i32_0 : i32, i32
  }
  func.func @transform_14(%arg0: i32) -> (i32, i32) {
    %c0_i32 = arith.constant 0 : i32
    %c0_i32_0 = arith.constant 0 : i32
    %c0_i32_1 = arith.constant 0 : i32
    return %c0_i32, %c0_i32_0 : i32, i32
  }
  func.func @transform_15(%arg0: i32) -> (i32, i32) {
    %c0_i32 = arith.constant 0 : i32
    %c0_i32_0 = arith.constant 0 : i32
    %c0_i32_1 = arith.constant 0 : i32
    return %c0_i32, %c0_i32_0 : i32, i32
  }
  func.func @transform_16(%arg0: i32) -> (i32, i32) {
    %c0_i32 = arith.constant 0 : i32
    %c0_i32_0 = arith.constant 0 : i32
    %c0_i32_1 = arith.constant 0 : i32
    return %c0_i32, %c0_i32_0 : i32, i32
  }
  func.func @transform_17(%arg0: i32) -> (i32, i32) {
    %c0_i32 = arith.constant 0 : i32
    %c0_i32_0 = arith.constant 0 : i32
    %c0_i32_1 = arith.constant 0 : i32
    return %c0_i32, %c0_i32_0 : i32, i32
  }
  func.func @transform_18(%arg0: i32) -> (i32, i32) {
    %c0_i32 = arith.constant 0 : i32
    %c0_i32_0 = arith.constant 0 : i32
    return %arg0, %c0_i32 : i32, i32
  }
  func.func @transform_19(%arg0: i32) -> (i32, i32) {
    %c0_i32 = arith.constant 0 : i32
    %c0_i32_0 = arith.constant 0 : i32
    return %arg0, %c0_i32 : i32, i32
  }
  func.func @transform_20(%arg0: i32) -> (i32, i32) {
    %c0_i32 = arith.constant 0 : i32
    %c0_i32_0 = arith.constant 0 : i32
    return %arg0, %c0_i32 : i32, i32
  }
  func.func @transform_21(%arg0: i32) -> (i32, i32) {
    %c0_i32 = arith.constant 0 : i32
    %c0_i32_0 = arith.constant 0 : i32
    %c0_i32_1 = arith.constant 0 : i32
    return %c0_i32, %c0_i32_0 : i32, i32
  }
}

</mosaic_0001>

<llo_original>
// kernel: tpu_custom_call.1
$region0: #{tpu_custom_call.1}
  #allocation0 [shape = 'u32[]', space=smem, size = 0x4, offset = 0x4, fixed_abs, tag = 'smem constant byte address 0x4 - core index']
  #allocation1 [shape = 'u32[144,128]{1,0:T(1,128)}', space=vmem, size = 0x12000, scoped, tag = 'internal scratch']
  %s0 = inlined_call_operand.hbm [shape: f32[8,128], index: 0, kind: input, shape index: {}]
  %s1 = inlined_call_operand.hbm [shape: f32[10,128], index: 1, kind: input, shape index: {}]
  %s2 = inlined_call_operand.hbm [shape: f32[128,128], index: 2, kind: input, shape index: {}]
  %s3 = inlined_call_operand.vmem [shape: f32[1,128], index: 3, kind: input, shape index: {}]
  %s4 = inlined_call_operand.hbm [shape: f32[128,128], index: 4, kind: input, shape index: {}]
  %s5 = inlined_call_operand.vmem [shape: f32[1,128], index: 5, kind: input, shape index: {}]
  %s6 = inlined_call_operand.hbm [shape: f32[128,128], index: 6, kind: input, shape index: {}]
  %s7 = inlined_call_operand.vmem [shape: f32[1,128], index: 7, kind: input, shape index: {}]
  %s8 = inlined_call_operand.hbm [shape: f32[128,128], index: 8, kind: input, shape index: {}]
  %s9 = inlined_call_operand.vmem [shape: f32[1,128], index: 9, kind: input, shape index: {}]
  %s10 = inlined_call_operand.hbm [shape: f32[128,256], index: 10, kind: input, shape index: {}]
  %s11 = inlined_call_operand.vmem [shape: f32[1,256], index: 11, kind: input, shape index: {}]
  %s12 = inlined_call_operand.hbm [shape: f32[256,128], index: 12, kind: input, shape index: {}]
  %s13 = inlined_call_operand.vmem [shape: f32[1,128], index: 13, kind: input, shape index: {}]
  %s14 = inlined_call_operand.hbm [shape: f32[128,128], index: 14, kind: input, shape index: {}]
  %s15 = inlined_call_operand.vmem [shape: f32[1,128], index: 15, kind: input, shape index: {}]
  %s16 = inlined_call_operand.hbm [shape: f32[128,128], index: 16, kind: input, shape index: {}]
  %s17 = inlined_call_operand.vmem [shape: f32[1,128], index: 17, kind: input, shape index: {}]
  %s18 = inlined_call_operand.hbm [shape: f32[8,128], index: 18, kind: output, shape index: {0}]
  %s19 = inlined_call_operand.hbm [shape: f32[8,128], index: 19, kind: output, shape index: {1}]
  %s20 = inlined_call_operand.hbm [shape: f32[8,128], index: 20, kind: output, shape index: {2}]
  %s21 = inlined_call_operand.hbm [shape: f32[1,128], index: 21, kind: output, shape index: {3}]
  %22 = xla_tuple %s18, %s19, %s20, %s21
  %s23 = sld [smem:[#allocation0]]
  $region150: #{tpu_custom_call.1} parent=0
    _
  %s25 = ssub.s32 1, %s23
  %s26 = scalar_select 0, %s25, %s23
  $region1: #{tpu_custom_call.1} parent=0
    #allocation2 [shape = 'u8[4096]{0}', space=vmem, size = 0x1000, scoped, tag = 'input window, operand 0, single buffered']
    #allocation3 [shape = 's32[1]{0}', space=sflag, size = 0x4, scoped, tag = 'scoped memory for tpu_custom_call.1']
    #allocation4 [shape = 's32[1]{0}', space=sflag, size = 0x4, scoped, tag = 'scoped memory for tpu_custom_call.1']
    #allocation5 [shape = 'u8[8192]{0}', space=vmem, size = 0x2000, scoped, tag = 'input window, operand 1, single buffered']
    #allocation6 [shape = 's32[1]{0}', space=sflag, size = 0x4, scoped, tag = 'scoped memory for tpu_custom_call.1']
    #allocation7 [shape = 'u8[65536]{0}', space=vmem, size = 0x10000, scoped, tag = 'input window, operand 2, single buffered']
    #allocation8 [shape = 'u8[65536]{0}', space=vmem, size = 0x10000, scoped, tag = 'input window, operand 4, single buffered']
    #allocation9 [shape = 's32[1]{0}', space=sflag, size = 0x4, scoped, tag = 'scoped memory for tpu_custom_call.1']
    #allocation10 [shape = 'u8[65536]{0}', space=vmem, size = 0x10000, scoped, tag = 'input window, operand 6, single buffered']
    #allocation11 [shape = 'u8[65536]{0}', space=vmem, size = 0x10000, scoped, tag = 'input window, operand 8, single buffered']
    #allocation12 [shape = 's32[1]{0}', space=sflag, size = 0x4, scoped, tag = 'scoped memory for tpu_custom_call.1']
    #allocation13 [shape = 'u8[131072]{0}', space=vmem, size = 0x20000, scoped, tag = 'input window, operand 10, single buffered']
    #allocation14 [shape = 'u8[131072]{0}', space=vmem, size = 0x20000, scoped, tag = 'input window, operand 12, single buffered']
    #allocation15 [shape = 's32[1]{0}', space=sflag, size = 0x4, scoped, tag = 'scoped memory for tpu_custom_call.1']
    #allocation16 [shape = 'u8[65536]{0}', space=vmem, size = 0x10000, scoped, tag = 'input window, operand 14, single buffered']
    #allocation17 [shape = 'u8[65536]{0}', space=vmem, size = 0x10000, scoped, tag = 'input window, operand 16, single buffered']
    #allocation18 [shape = 's32[1]{0}', space=sflag, size = 0x4, scoped, tag = 'scoped memory for tpu_custom_call.1']
    #allocation19 [shape = 'u8[4096]{0}', space=vmem, size = 0x1000, scoped, tag = 'output window, operand 0, single buffered']
    #allocation20 [shape = 'u8[4096]{0}', space=vmem, size = 0x1000, scoped, tag = 'output window, operand 1, single buffered']
    #allocation21 [shape = 's32[1]{0}', space=sflag, size = 0x4, scoped, tag = 'scoped memory for tpu_custom_call.1']
    #allocation22 [shape = 'u8[4096]{0}', space=vmem, size = 0x1000, scoped, tag = 'output window, operand 2, single buffered']
    #allocation23 [shape = 'u8[512]{0}', space=vmem, size = 0x400, scoped, tag = 'output window, operand 3, single buffered']
    #allocation24 [shape = 's32[1]{0}', space=sflag, size = 0x4, scoped, tag = 'scoped memory for tpu_custom_call.1']
    %27 = vsyncpa [#allocation3], 0
    %28 = vsyncpa [#allocation6], 0
    %29 = vsyncpa [#allocation9], 0
    %30 = vsyncpa [#allocation12], 0
    %31 = vsyncpa [#allocation15], 0
    %32 = vsyncpa [#allocation18], 0
    %33 = vsyncpa [#allocation4], 0
    %34 = vsyncpa [#allocation21], 0
    %35 = vsyncpa [#allocation24], 0
    // Predicated region
    $region2: #{tpu_custom_call.1} parent=1 // pred_check
      _
    $region3: #{tpu_custom_call.1} parent=1 // pred_check_branch
      %37 = sbr.rel (0) target = $region5
    $region4: #{tpu_custom_call.1} parent=1 // pred_region
      %s39 = ssub.s32 128, 128
      %40 = vsyncadd [#allocation3], %s39
      %s42 = sshll.u32 [#allocation2], 4
      %s43 = int_to_ptr.vmem [resolvable:$true] %s42
      %45 = dma.hbm_to_vmem [thread:$0]  %s0, 128, %s43, [#allocation3]
    $region5: #{tpu_custom_call.1} parent=1 // pred_fallthru
      _
    // Predicated region
    $region6: #{tpu_custom_call.1} parent=1 // pred_check
      _
    $region7: #{tpu_custom_call.1} parent=1 // pred_check_branch
      %47 = sbr.rel (0) target = $region9
    $region8: #{tpu_custom_call.1} parent=1 // pred_region
      %s49 = ssub.s32 256, 256
      %50 = vsyncadd [#allocation6], %s49
      %s51 = sshll.u32 [#allocation5], 4
      %s52 = int_to_ptr.vmem [resolvable:$true] %s51
      %57 = dma.hbm_to_vmem [thread:$0]  %s1, 256, %s52, [#allocation6], 128, 128, 8
    $region9: #{tpu_custom_call.1} parent=1 // pred_fallthru
      _
    // Predicated region
    $region10: #{tpu_custom_call.1} parent=1 // pred_check
      _
    $region11: #{tpu_custom_call.1} parent=1 // pred_check_branch
      %59 = sbr.rel (0) target = $region13
    $region12: #{tpu_custom_call.1} parent=1 // pred_region
      %s61 = ssub.s32 2048, 2048
      %62 = vsyncadd [#allocation6], %s61
      %s63 = sshll.u32 [#allocation7], 4
      %s64 = int_to_ptr.vmem [resolvable:$true] %s63
      %69 = dma.hbm_to_vmem [thread:$0]  %s2, 2048, %s64, [#allocation6], 128, 128, 8
    $region13: #{tpu_custom_call.1} parent=1 // pred_fallthru
      _
    // Predicated region
    $region14: #{tpu_custom_call.1} parent=1 // pred_check
      _
    $region15: #{tpu_custom_call.1} parent=1 // pred_check_branch
      %71 = sbr.rel (0) target = $region17
    $region16: #{tpu_custom_call.1} parent=1 // pred_region
      _
    $region17: #{tpu_custom_call.1} parent=1 // pred_fallthru
      _
    // Predicated region
    $region18: #{tpu_custom_call.1} parent=1 // pred_check
      _
    $region19: #{tpu_custom_call.1} parent=1 // pred_check_branch
      %73 = sbr.rel (0) target = $region21
    $region20: #{tpu_custom_call.1} parent=1 // pred_region
      %s75 = ssub.s32 2048, 2048
      %76 = vsyncadd [#allocation9], %s75
      %s77 = sshll.u32 [#allocation8], 4
      %s78 = int_to_ptr.vmem [resolvable:$true] %s77
      %83 = dma.hbm_to_vmem [thread:$0]  %s4, 2048, %s78, [#allocation9], 128, 128, 8
    $region21: #{tpu_custom_call.1} parent=1 // pred_fallthru
      _
    // Predicated region
    $region22: #{tpu_custom_call.1} parent=1 // pred_check
      _
    $region23: #{tpu_custom_call.1} parent=1 // pred_check_branch
      %85 = sbr.rel (0) target = $region25
    $region24: #{tpu_custom_call.1} parent=1 // pred_region
      _
    $region25: #{tpu_custom_call.1} parent=1 // pred_fallthru
      _
    // Predicated region
    $region26: #{tpu_custom_call.1} parent=1 // pred_check
      _
    $region27: #{tpu_custom_call.1} parent=1 // pred_check_branch
      %87 = sbr.rel (0) target = $region29
    $region28: #{tpu_custom_call.1} parent=1 // pred_region
      %s89 = ssub.s32 2048, 2048
      %90 = vsyncadd [#allocation9], %s89
      %s91 = sshll.u32 [#allocation10], 4
      %s92 = int_to_ptr.vmem [resolvable:$true] %s91
      %97 = dma.hbm_to_vmem [thread:$0]  %s6, 2048, %s92, [#allocation9], 128, 128, 8
    $region29: #{tpu_custom_call.1} parent=1 // pred_fallthru
      _
    // Predicated region
    $region30: #{tpu_custom_call.1} parent=1 // pred_check
      _
    $region31: #{tpu_custom_call.1} parent=1 // pred_check_branch
      %99 = sbr.rel (0) target = $region33
    $region32: #{tpu_custom_call.1} parent=1 // pred_region
      _
    $region33: #{tpu_custom_call.1} parent=1 // pred_fallthru
      _
    // Predicated region
    $region34: #{tpu_custom_call.1} parent=1 // pred_check
      _
    $region35: #{tpu_custom_call.1} parent=1 // pred_check_branch
      %101 = sbr.rel (0) target = $region37
    $region36: #{tpu_custom_call.1} parent=1 // pred_region
      %s103 = ssub.s32 2048, 2048
      %104 = vsyncadd [#allocation12], %s103
      %s105 = sshll.u32 [#allocation11], 4
      %s106 = int_to_ptr.vmem [resolvable:$true] %s105
      %111 = dma.hbm_to_vmem [thread:$0]  %s8, 2048, %s106, [#allocation12], 128, 128, 8
    $region37: #{tpu_custom_call.1} parent=1 // pred_fallthru
      _
    // Predicated region
    $region38: #{tpu_custom_call.1} parent=1 // pred_check
      _
    $region39: #{tpu_custom_call.1} parent=1 // pred_check_branch
      %113 = sbr.rel (0) target = $region41
    $region40: #{tpu_custom_call.1} parent=1 // pred_region
      _
    $region41: #{tpu_custom_call.1} parent=1 // pred_fallthru
      _
    // Predicated region
    $region42: #{tpu_custom_call.1} parent=1 // pred_check
      _
    $region43: #{tpu_custom_call.1} parent=1 // pred_check_branch
      %115 = sbr.rel (0) target = $region45
    $region44: #{tpu_custom_call.1} parent=1 // pred_region
      %s117 = ssub.s32 4096, 4096
      %118 = vsyncadd [#allocation12], %s117
      %s119 = sshll.u32 [#allocation13], 4
      %s120 = int_to_ptr.vmem [resolvable:$true] %s119
      %125 = dma.hbm_to_vmem [thread:$0]  %s10, 4096, %s120, [#allocation12], 256, 256, 16
    $region45: #{tpu_custom_call.1} parent=1 // pred_fallthru
      _
    // Predicated region
    $region46: #{tpu_custom_call.1} parent=1 // pred_check
      _
    $region47: #{tpu_custom_call.1} parent=1 // pred_check_branch
      %127 = sbr.rel (0) target = $region49
    $region48: #{tpu_custom_call.1} parent=1 // pred_region
      _
    $region49: #{tpu_custom_call.1} parent=1 // pred_fallthru
      _
    // Predicated region
    $region50: #{tpu_custom_call.1} parent=1 // pred_check
      _
    $region51: #{tpu_custom_call.1} parent=1 // pred_check_branch
      %129 = sbr.rel (0) target = $region53
    $region52: #{tpu_custom_call.1} parent=1 // pred_region
      %s131 = ssub.s32 4096, 4096
      %132 = vsyncadd [#allocation15], %s131
      %s133 = sshll.u32 [#allocation14], 4
      %s134 = int_to_ptr.vmem [resolvable:$true] %s133
      %139 = dma.hbm_to_vmem [thread:$0]  %s12, 4096, %s134, [#allocation15], 128, 128, 8
    $region53: #{tpu_custom_call.1} parent=1 // pred_fallthru
      _
    // Predicated region
    $region54: #{tpu_custom_call.1} parent=1 // pred_check
      _
    $region55: #{tpu_custom_call.1} parent=1 // pred_check_branch
      %141 = sbr.rel (0) target = $region57
    $region56: #{tpu_custom_call.1} parent=1 // pred_region
      _
    $region57: #{tpu_custom_call.1} parent=1 // pred_fallthru
      _
    // Predicated region
    $region58: #{tpu_custom_call.1} parent=1 // pred_check
      _
    $region59: #{tpu_custom_call.1} parent=1 // pred_check_branch
      %143 = sbr.rel (0) target = $region61
    $region60: #{tpu_custom_call.1} parent=1 // pred_region
      %s145 = ssub.s32 2048, 2048
      %146 = vsyncadd [#allocation15], %s145
      %s147 = sshll.u32 [#allocation16], 4
      %s148 = int_to_ptr.vmem [resolvable:$true] %s147
      %153 = dma.hbm_to_vmem [thread:$0]  %s14, 2048, %s148, [#allocation15], 128, 128, 8
    $region61: #{tpu_custom_call.1} parent=1 // pred_fallthru
      _
    // Predicated region
    $region62: #{tpu_custom_call.1} parent=1 // pred_check
      _
    $region63: #{tpu_custom_call.1} parent=1 // pred_check_branch
      %155 = sbr.rel (0) target = $region65
    $region64: #{tpu_custom_call.1} parent=1 // pred_region
      _
    $region65: #{tpu_custom_call.1} parent=1 // pred_fallthru
      _
    // Predicated region
    $region66: #{tpu_custom_call.1} parent=1 // pred_check
      _
    $region67: #{tpu_custom_call.1} parent=1 // pred_check_branch
      %157 = sbr.rel (0) target = $region69
    $region68: #{tpu_custom_call.1} parent=1 // pred_region
      %s159 = ssub.s32 2048, 2048
      %160 = vsyncadd [#allocation18], %s159
      %s161 = sshll.u32 [#allocation17], 4
      %s162 = int_to_ptr.vmem [resolvable:$true] %s161
      %167 = dma.hbm_to_vmem [thread:$0]  %s16, 2048, %s162, [#allocation18], 128, 128, 8
    $region69: #{tpu_custom_call.1} parent=1 // pred_fallthru
      _
    // Predicated region
    $region70: #{tpu_custom_call.1} parent=1 // pred_check
      _
    $region71: #{tpu_custom_call.1} parent=1 // pred_check_branch
      %169 = sbr.rel (0) target = $region73
    $region72: #{tpu_custom_call.1} parent=1 // pred_region
      _
    $region73: #{tpu_custom_call.1} parent=1 // pred_fallthru
      _
    // Predicated region
    $region74: #{tpu_custom_call.1} parent=1 // pred_check
      _
    $region75: #{tpu_custom_call.1} parent=1 // pred_check_branch
      %171 = sbr.rel (0) target = $region77
    $region76: #{tpu_custom_call.1} parent=1 // pred_region
      %172 = dma.done [#allocation3], 128
    $region77: #{tpu_custom_call.1} parent=1 // pred_fallthru
      _
    // Predicated region
    $region78: #{tpu_custom_call.1} parent=1 // pred_check
      _
    $region79: #{tpu_custom_call.1} parent=1 // pred_check_branch
      %174 = sbr.rel (0) target = $region81
    $region80: #{tpu_custom_call.1} parent=1 // pred_region
      %175 = dma.done [#allocation6], 256
    $region81: #{tpu_custom_call.1} parent=1 // pred_fallthru
      _
    // Predicated region
    $region82: #{tpu_custom_call.1} parent=1 // pred_check
      _
    $region83: #{tpu_custom_call.1} parent=1 // pred_check_branch
      %177 = sbr.rel (0) target = $region85
    $region84: #{tpu_custom_call.1} parent=1 // pred_region
      %178 = dma.done [#allocation6], 2048
    $region85: #{tpu_custom_call.1} parent=1 // pred_fallthru
      _
    // Predicated region
    $region86: #{tpu_custom_call.1} parent=1 // pred_check
      _
    $region87: #{tpu_custom_call.1} parent=1 // pred_check_branch
      %180 = sbr.rel (0) target = $region89
    $region88: #{tpu_custom_call.1} parent=1 // pred_region
      %181 = dma.done [#allocation9], 2048
    $region89: #{tpu_custom_call.1} parent=1 // pred_fallthru
      _
    // Predicated region
    $region90: #{tpu_custom_call.1} parent=1 // pred_check
      _
    $region91: #{tpu_custom_call.1} parent=1 // pred_check_branch
      %183 = sbr.rel (0) target = $region93
    $region92: #{tpu_custom_call.1} parent=1 // pred_region
      %184 = dma.done [#allocation9], 2048
    $region93: #{tpu_custom_call.1} parent=1 // pred_fallthru
      _
    // Predicated region
    $region94: #{tpu_custom_call.1} parent=1 // pred_check
      _
    $region95: #{tpu_custom_call.1} parent=1 // pred_check_branch
      %186 = sbr.rel (0) target = $region97
    $region96: #{tpu_custom_call.1} parent=1 // pred_region
      %187 = dma.done [#allocation12], 2048
    $region97: #{tpu_custom_call.1} parent=1 // pred_fallthru
      _
    // Predicated region
    $region98: #{tpu_custom_call.1} parent=1 // pred_check
      _
    $region99: #{tpu_custom_call.1} parent=1 // pred_check_branch
      %189 = sbr.rel (0) target = $region101
    $region100: #{tpu_custom_call.1} parent=1 // pred_region
      %190 = dma.done [#allocation12], 4096
    $region101: #{tpu_custom_call.1} parent=1 // pred_fallthru
      _
    // Predicated region
    $region102: #{tpu_custom_call.1} parent=1 // pred_check
      _
    $region103: #{tpu_custom_call.1} parent=1 // pred_check_branch
      %192 = sbr.rel (0) target = $region105
    $region104: #{tpu_custom_call.1} parent=1 // pred_region
      %193 = dma.done [#allocation15], 4096
    $region105: #{tpu_custom_call.1} parent=1 // pred_fallthru
      _
    // Predicated region
    $region106: #{tpu_custom_call.1} parent=1 // pred_check
      _
    $region107: #{tpu_custom_call.1} parent=1 // pred_check_branch
      %195 = sbr.rel (0) target = $region109
    $region108: #{tpu_custom_call.1} parent=1 // pred_region
      %196 = dma.done [#allocation15], 2048
    $region109: #{tpu_custom_call.1} parent=1 // pred_fallthru
      _
    // Predicated region
    $region110: #{tpu_custom_call.1} parent=1 // pred_check
      _
    $region111: #{tpu_custom_call.1} parent=1 // pred_check_branch
      %198 = sbr.rel (0) target = $region113
    $region112: #{tpu_custom_call.1} parent=1 // pred_region
      %199 = dma.done [#allocation18], 2048
    $region113: #{tpu_custom_call.1} parent=1 // pred_fallthru
      _
    %v200 = vld [vmem:[#allocation2] sm:$0xff]
    %v201 = vld [vmem:[#allocation7] sm:$0xff]
    %v202 = vld [vmem:[#allocation7 + $0x8] sm:$0xff]
    %v203 = vld [vmem:[#allocation7 + $0x10] sm:$0xff]
    %v204 = vld [vmem:[#allocation7 + $0x18] sm:$0xff]
    %v205 = vld [vmem:[#allocation7 + $0x20] sm:$0xff]
    %v206 = vld [vmem:[#allocation7 + $0x28] sm:$0xff]
    %v207 = vld [vmem:[#allocation7 + $0x30] sm:$0xff]
    %v208 = vld [vmem:[#allocation7 + $0x38] sm:$0xff]
    %v209 = vld [vmem:[#allocation7 + $0x40] sm:$0xff]
    %v210 = vld [vmem:[#allocation7 + $0x48] sm:$0xff]
    %v211 = vld [vmem:[#allocation7 + $0x50] sm:$0xff]
    %v212 = vld [vmem:[#allocation7 + $0x58] sm:$0xff]
    %v213 = vld [vmem:[#allocation7 + $0x60] sm:$0xff]
    %v214 = vld [vmem:[#allocation7 + $0x68] sm:$0xff]
    %v215 = vld [vmem:[#allocation7 + $0x70] sm:$0xff]
    %v216 = vld [vmem:[#allocation7 + $0x78] sm:$0xff]
    %v217 = vld [vmem:[%s3] sm:$0x1]
    %v218 = vld [vmem:[#allocation8] sm:$0xff]
    %v219 = vld [vmem:[#allocation8 + $0x8] sm:$0xff]
    %v220 = vld [vmem:[#allocation8 + $0x10] sm:$0xff]
    %v221 = vld [vmem:[#allocation8 + $0x18] sm:$0xff]
    %v222 = vld [vmem:[#allocation8 + $0x20] sm:$0xff]
    %v223 = vld [vmem:[#allocation8 + $0x28] sm:$0xff]
    %v224 = vld [vmem:[#allocation8 + $0x30] sm:$0xff]
    %v225 = vld [vmem:[#allocation8 + $0x38] sm:$0xff]
    %v226 = vld [vmem:[#allocation8 + $0x40] sm:$0xff]
    %v227 = vld [vmem:[#allocation8 + $0x48] sm:$0xff]
    %v228 = vld [vmem:[#allocation8 + $0x50] sm:$0xff]
    %v229 = vld [vmem:[#allocation8 + $0x58] sm:$0xff]
    %v230 = vld [vmem:[#allocation8 + $0x60] sm:$0xff]
    %v231 = vld [vmem:[#allocation8 + $0x68] sm:$0xff]
    %v232 = vld [vmem:[#allocation8 + $0x70] sm:$0xff]
    %v233 = vld [vmem:[#allocation8 + $0x78] sm:$0xff]
    %v234 = vld [vmem:[%s5] sm:$0x1]
    %v235 = vld [vmem:[#allocation10] sm:$0xff]
    %v236 = vld [vmem:[#allocation10 + $0x8] sm:$0xff]
    %v237 = vld [vmem:[#allocation10 + $0x10] sm:$0xff]
    %v238 = vld [vmem:[#allocation10 + $0x18] sm:$0xff]
    %v239 = vld [vmem:[#allocation10 + $0x20] sm:$0xff]
    %v240 = vld [vmem:[#allocation10 + $0x28] sm:$0xff]
    %v241 = vld [vmem:[#allocation10 + $0x30] sm:$0xff]
    %v242 = vld [vmem:[#allocation10 + $0x38] sm:$0xff]
    %v243 = vld [vmem:[#allocation10 + $0x40] sm:$0xff]
    %v244 = vld [vmem:[#allocation10 + $0x48] sm:$0xff]
    %v245 = vld [vmem:[#allocation10 + $0x50] sm:$0xff]
    %v246 = vld [vmem:[#allocation10 + $0x58] sm:$0xff]
    %v247 = vld [vmem:[#allocation10 + $0x60] sm:$0xff]
    %v248 = vld [vmem:[#allocation10 + $0x68] sm:$0xff]
    %v249 = vld [vmem:[#allocation10 + $0x70] sm:$0xff]
    %v250 = vld [vmem:[#allocation10 + $0x78] sm:$0xff]
    %v251 = vld [vmem:[%s7] sm:$0x1]
    %v252 = vld [vmem:[#allocation11] sm:$0xff]
    %v253 = vld [vmem:[#allocation11 + $0x8] sm:$0xff]
    %v254 = vld [vmem:[#allocation11 + $0x10] sm:$0xff]
    %v255 = vld [vmem:[#allocation11 + $0x18] sm:$0xff]
    %v256 = vld [vmem:[#allocation11 + $0x20] sm:$0xff]
    %v257 = vld [vmem:[#allocation11 + $0x28] sm:$0xff]
    %v258 = vld [vmem:[#allocation11 + $0x30] sm:$0xff]
    %v259 = vld [vmem:[#allocation11 + $0x38] sm:$0xff]
    %v260 = vld [vmem:[#allocation11 + $0x40] sm:$0xff]
    %v261 = vld [vmem:[#allocation11 + $0x48] sm:$0xff]
    %v262 = vld [vmem:[#allocation11 + $0x50] sm:$0xff]
    %v263 = vld [vmem:[#allocation11 + $0x58] sm:$0xff]
    %v264 = vld [vmem:[#allocation11 + $0x60] sm:$0xff]
    %v265 = vld [vmem:[#allocation11 + $0x68] sm:$0xff]
    %v266 = vld [vmem:[#allocation11 + $0x70] sm:$0xff]
    %v267 = vld [vmem:[#allocation11 + $0x78] sm:$0xff]
    %v268 = vld [vmem:[%s9] sm:$0x1]
    %v269 = vld [vmem:[#allocation13] sm:$0xff]
    %v270 = vld [vmem:[#allocation13 + $0x8] sm:$0xff]
    %v271 = vld [vmem:[#allocation13 + $0x10] sm:$0xff]
    %v272 = vld [vmem:[#allocation13 + $0x18] sm:$0xff]
    %v273 = vld [vmem:[#allocation13 + $0x20] sm:$0xff]
    %v274 = vld [vmem:[#allocation13 + $0x28] sm:$0xff]
    %v275 = vld [vmem:[#allocation13 + $0x30] sm:$0xff]
    %v276 = vld [vmem:[#allocation13 + $0x38] sm:$0xff]
    %v277 = vld [vmem:[#allocation13 + $0x40] sm:$0xff]
    %v278 = vld [vmem:[#allocation13 + $0x48] sm:$0xff]
    %v279 = vld [vmem:[#allocation13 + $0x50] sm:$0xff]
    %v280 = vld [vmem:[#allocation13 + $0x58] sm:$0xff]
    %v281 = vld [vmem:[#allocation13 + $0x60] sm:$0xff]
    %v282 = vld [vmem:[#allocation13 + $0x68] sm:$0xff]
    %v283 = vld [vmem:[#allocation13 + $0x70] sm:$0xff]
    %v284 = vld [vmem:[#allocation13 + $0x78] sm:$0xff]
    %v285 = vld [vmem:[#allocation13 + $0x80] sm:$0xff]
    %v286 = vld [vmem:[#allocation13 + $0x88] sm:$0xff]
    %v287 = vld [vmem:[#allocation13 + $0x90] sm:$0xff]
    %v288 = vld [vmem:[#allocation13 + $0x98] sm:$0xff]
    %v289 = vld [vmem:[#allocation13 + $0xa0] sm:$0xff]
    %v290 = vld [vmem:[#allocation13 + $0xa8] sm:$0xff]
    %v291 = vld [vmem:[#allocation13 + $0xb0] sm:$0xff]
    %v292 = vld [vmem:[#allocation13 + $0xb8] sm:$0xff]
    %v293 = vld [vmem:[#allocation13 + $0xc0] sm:$0xff]
    %v294 = vld [vmem:[#allocation13 + $0xc8] sm:$0xff]
    %v295 = vld [vmem:[#allocation13 + $0xd0] sm:$0xff]
    %v296 = vld [vmem:[#allocation13 + $0xd8] sm:$0xff]
    %v297 = vld [vmem:[#allocation13 + $0xe0] sm:$0xff]
    %v298 = vld [vmem:[#allocation13 + $0xe8] sm:$0xff]
    %v299 = vld [vmem:[#allocation13 + $0xf0] sm:$0xff]
    %v300 = vld [vmem:[#allocation13 + $0xf8] sm:$0xff]
    %v301 = vld [vmem:[%s11] sm:$0x3]
    %v302 = vld [vmem:[#allocation14] sm:$0xff]
    %v303 = vld [vmem:[#allocation14 + $0x8] sm:$0xff]
    %v304 = vld [vmem:[#allocation14 + $0x10] sm:$0xff]
    %v305 = vld [vmem:[#allocation14 + $0x18] sm:$0xff]
    %v306 = vld [vmem:[#allocation14 + $0x20] sm:$0xff]
    %v307 = vld [vmem:[#allocation14 + $0x28] sm:$0xff]
    %v308 = vld [vmem:[#allocation14 + $0x30] sm:$0xff]
    %v309 = vld [vmem:[#allocation14 + $0x38] sm:$0xff]
    %v310 = vld [vmem:[#allocation14 + $0x40] sm:$0xff]
    %v311 = vld [vmem:[#allocation14 + $0x48] sm:$0xff]
    %v312 = vld [vmem:[#allocation14 + $0x50] sm:$0xff]
    %v313 = vld [vmem:[#allocation14 + $0x58] sm:$0xff]
    %v314 = vld [vmem:[#allocation14 + $0x60] sm:$0xff]
    %v315 = vld [vmem:[#allocation14 + $0x68] sm:$0xff]
    %v316 = vld [vmem:[#allocation14 + $0x70] sm:$0xff]
    %v317 = vld [vmem:[#allocation14 + $0x78] sm:$0xff]
    %v318 = vld [vmem:[#allocation14 + $0x80] sm:$0xff]
    %v319 = vld [vmem:[#allocation14 + $0x88] sm:$0xff]
    %v320 = vld [vmem:[#allocation14 + $0x90] sm:$0xff]
    %v321 = vld [vmem:[#allocation14 + $0x98] sm:$0xff]
    %v322 = vld [vmem:[#allocation14 + $0xa0] sm:$0xff]
    %v323 = vld [vmem:[#allocation14 + $0xa8] sm:$0xff]
    %v324 = vld [vmem:[#allocation14 + $0xb0] sm:$0xff]
    %v325 = vld [vmem:[#allocation14 + $0xb8] sm:$0xff]
    %v326 = vld [vmem:[#allocation14 + $0xc0] sm:$0xff]
    %v327 = vld [vmem:[#allocation14 + $0xc8] sm:$0xff]
    %v328 = vld [vmem:[#allocation14 + $0xd0] sm:$0xff]
    %v329 = vld [vmem:[#allocation14 + $0xd8] sm:$0xff]
    %v330 = vld [vmem:[#allocation14 + $0xe0] sm:$0xff]
    %v331 = vld [vmem:[#allocation14 + $0xe8] sm:$0xff]
    %v332 = vld [vmem:[#allocation14 + $0xf0] sm:$0xff]
    %v333 = vld [vmem:[#allocation14 + $0xf8] sm:$0xff]
    %v334 = vld [vmem:[%s13] sm:$0x1]
    %v335 = vld [vmem:[#allocation16] sm:$0xff]
    %v336 = vld [vmem:[#allocation16 + $0x8] sm:$0xff]
    %v337 = vld [vmem:[#allocation16 + $0x10] sm:$0xff]
    %v338 = vld [vmem:[#allocation16 + $0x18] sm:$0xff]
    %v339 = vld [vmem:[#allocation16 + $0x20] sm:$0xff]
    %v340 = vld [vmem:[#allocation16 + $0x28] sm:$0xff]
    %v341 = vld [vmem:[#allocation16 + $0x30] sm:$0xff]
    %v342 = vld [vmem:[#allocation16 + $0x38] sm:$0xff]
    %v343 = vld [vmem:[#allocation16 + $0x40] sm:$0xff]
    %v344 = vld [vmem:[#allocation16 + $0x48] sm:$0xff]
    %v345 = vld [vmem:[#allocation16 + $0x50] sm:$0xff]
    %v346 = vld [vmem:[#allocation16 + $0x58] sm:$0xff]
    %v347 = vld [vmem:[#allocation16 + $0x60] sm:$0xff]
    %v348 = vld [vmem:[#allocation16 + $0x68] sm:$0xff]
    %v349 = vld [vmem:[#allocation16 + $0x70] sm:$0xff]
    %v350 = vld [vmem:[#allocation16 + $0x78] sm:$0xff]
    %v351 = vld [vmem:[%s15] sm:$0x1]
    %v353 = vlaneseq
    %v354 = vshrl.u32 %v353, 7
    %v355 = vsub.s32 0, %v354
    %v356 = vrot.slane %v217, %v355
    %358 = vmatprep.subr.mxu0 0.0
    %359 = vmatpush1.msra.mxu0 %v201
    %360 = vmatprep.subr.mxu0 0.0
    %361 = vmatpush1.msra.mxu0 %v202
    %362 = vmatprep.subr.mxu0 0.0
    %363 = vmatpush1.msra.mxu0 %v203
    %364 = vmatprep.subr.mxu0 0.0
    %365 = vmatpush1.msra.mxu0 %v204
    %366 = vmatprep.subr.mxu0 0.0
    %367 = vmatpush1.msra.mxu0 %v205
    %368 = vmatprep.subr.mxu0 0.0
    %369 = vmatpush1.msra.mxu0 %v206
    %370 = vmatprep.subr.mxu0 0.0
    %371 = vmatpush1.msra.mxu0 %v207
    %372 = vmatprep.subr.mxu0 0.0
    %373 = vmatpush1.msra.mxu0 %v208
    %374 = vmatprep.subr.mxu0 0.0
    %375 = vmatpush1.msra.mxu0 %v209
    %376 = vmatprep.subr.mxu0 0.0
    %377 = vmatpush1.msra.mxu0 %v210
    %378 = vmatprep.subr.mxu0 0.0
    %379 = vmatpush1.msra.mxu0 %v211
    %380 = vmatprep.subr.mxu0 0.0
    %381 = vmatpush1.msra.mxu0 %v212
    %382 = vmatprep.subr.mxu0 0.0
    %383 = vmatpush1.msra.mxu0 %v213
    %384 = vmatprep.subr.mxu0 0.0
    %385 = vmatpush1.msra.mxu0 %v214
    %386 = vmatprep.subr.mxu0 0.0
    %387 = vmatpush1.msra.mxu0 %v215
    %388 = vmatprep.subr.mxu0 0.0
    %389 = vmatpush1.msra.mxu0 %v216
    %390 = vmatprep.subr.mxu0 0.0
    %391 = vmatpush1.msra.mxu0 0.0
    %392 = vmatprep.subr.mxu0 0.0
    %393 = vmatpush1.msra.mxu0 0.0
    %394 = vmatprep.subr.mxu0 0.0
    %395 = vmatpush1.msra.mxu0 0.0
    %396 = vmatprep.subr.mxu0 0.0
    %397 = vmatpush1.msra.mxu0 0.0
    %398 = vmatprep.subr.mxu0 0.0
    %399 = vmatpush1.msra.mxu0 0.0
    %400 = vmatprep.subr.mxu0 0.0
    %401 = vmatpush1.msra.mxu0 0.0
    %402 = vmatprep.subr.mxu0 0.0
    %403 = vmatpush1.msra.mxu0 0.0
    %404 = vmatprep.subr.mxu0 0.0
    %405 = vmatpush1.msra.mxu0 0.0
    %406 = vmatprep.subr.mxu0 0.0
    %407 = vmatpush1.msra.mxu0 0.0
    %408 = vmatprep.subr.mxu0 0.0
    %409 = vmatpush1.msra.mxu0 0.0
    %410 = vmatprep.subr.mxu0 0.0
    %411 = vmatpush1.msra.mxu0 0.0
    %412 = vmatprep.subr.mxu0 0.0
    %413 = vmatpush1.msra.mxu0 0.0
    %414 = vmatprep.subr.mxu0 0.0
    %415 = vmatpush1.msra.mxu0 0.0
    %416 = vmatprep.subr.mxu0 0.0
    %417 = vmatpush1.msra.mxu0 0.0
    %418 = vmatprep.subr.mxu0 0.0
    %419 = vmatpush1.msra.mxu0 0.0
    %420 = vmatprep.subr.mxu0 0.0
    %421 = vmatpush1.msra.mxu0 0.0
    %422 = vmatprep.mubr.f32.mxu0 0.0
    %423 = vmatmul.mubr.f32.gmra.mrb[0].mxu0 %v200
    %v424 = vpop.f32.mrb[0].mxu0
    %v425 = vadd.f32 %v356, %v424
    %v426 = vpop.f32.mrb[0].mxu0
    %427 = vdwg.mxu0
    %v428 = vmax.f32 %v425, 0.0
    %v430 = vlaneseq
    %v431 = vshrl.u32 %v430, 7
    %v432 = vsub.s32 0, %v431
    %v433 = vrot.slane %v234, %v432
    %435 = vmatprep.subr.mxu0 0.0
    %436 = vmatpush1.msra.mxu0 %v218
    %437 = vmatprep.subr.mxu0 0.0
    %438 = vmatpush1.msra.mxu0 %v219
    %439 = vmatprep.subr.mxu0 0.0
    %440 = vmatpush1.msra.mxu0 %v220
    %441 = vmatprep.subr.mxu0 0.0
    %442 = vmatpush1.msra.mxu0 %v221
    %443 = vmatprep.subr.mxu0 0.0
    %444 = vmatpush1.msra.mxu0 %v222
    %445 = vmatprep.subr.mxu0 0.0
    %446 = vmatpush1.msra.mxu0 %v223
    %447 = vmatprep.subr.mxu0 0.0
    %448 = vmatpush1.msra.mxu0 %v224
    %449 = vmatprep.subr.mxu0 0.0
    %450 = vmatpush1.msra.mxu0 %v225
    %451 = vmatprep.subr.mxu0 0.0
    %452 = vmatpush1.msra.mxu0 %v226
    %453 = vmatprep.subr.mxu0 0.0
    %454 = vmatpush1.msra.mxu0 %v227
    %455 = vmatprep.subr.mxu0 0.0
    %456 = vmatpush1.msra.mxu0 %v228
    %457 = vmatprep.subr.mxu0 0.0
    %458 = vmatpush1.msra.mxu0 %v229
    %459 = vmatprep.subr.mxu0 0.0
    %460 = vmatpush1.msra.mxu0 %v230
    %461 = vmatprep.subr.mxu0 0.0
    %462 = vmatpush1.msra.mxu0 %v231
    %463 = vmatprep.subr.mxu0 0.0
    %464 = vmatpush1.msra.mxu0 %v232
    %465 = vmatprep.subr.mxu0 0.0
    %466 = vmatpush1.msra.mxu0 %v233
    %467 = vmatprep.subr.mxu0 0.0
    %468 = vmatpush1.msra.mxu0 0.0
    %469 = vmatprep.subr.mxu0 0.0
    %470 = vmatpush1.msra.mxu0 0.0
    %471 = vmatprep.subr.mxu0 0.0
    %472 = vmatpush1.msra.mxu0 0.0
    %473 = vmatprep.subr.mxu0 0.0
    %474 = vmatpush1.msra.mxu0 0.0
    %475 = vmatprep.subr.mxu0 0.0
    %476 = vmatpush1.msra.mxu0 0.0
    %477 = vmatprep.subr.mxu0 0.0
    %478 = vmatpush1.msra.mxu0 0.0
    %479 = vmatprep.subr.mxu0 0.0
    %480 = vmatpush1.msra.mxu0 0.0
    %481 = vmatprep.subr.mxu0 0.0
    %482 = vmatpush1.msra.mxu0 0.0
    %483 = vmatprep.subr.mxu0 0.0
    %484 = vmatpush1.msra.mxu0 0.0
    %485 = vmatprep.subr.mxu0 0.0
    %486 = vmatpush1.msra.mxu0 0.0
    %487 = vmatprep.subr.mxu0 0.0
    %488 = vmatpush1.msra.mxu0 0.0
    %489 = vmatprep.subr.mxu0 0.0
    %490 = vmatpush1.msra.mxu0 0.0
    %491 = vmatprep.subr.mxu0 0.0
    %492 = vmatpush1.msra.mxu0 0.0
    %493 = vmatprep.subr.mxu0 0.0
    %494 = vmatpush1.msra.mxu0 0.0
    %495 = vmatprep.subr.mxu0 0.0
    %496 = vmatpush1.msra.mxu0 0.0
    %497 = vmatprep.subr.mxu0 0.0
    %498 = vmatpush1.msra.mxu0 0.0
    %499 = vmatprep.mubr.f32.mxu0 0.0
    %500 = vmatmul.mubr.f32.gmra.mrb[0].mxu0 %v428
    %v501 = vpop.f32.mrb[0].mxu0
    %v502 = vadd.f32 %v433, %v501
    %v503 = vpop.f32.mrb[0].mxu0
    %504 = vdwg.mxu0
    %v506 = vlaneseq
    %v507 = vshrl.u32 %v506, 7
    %v508 = vsub.s32 0, %v507
    %v509 = vrot.slane %v251, %v508
    %511 = vmatprep.subr.mxu0 0.0
    %512 = vmatpush1.msra.mxu0 %v235
    %513 = vmatprep.subr.mxu0 0.0
    %514 = vmatpush1.msra.mxu0 %v236
    %515 = vmatprep.subr.mxu0 0.0
    %516 = vmatpush1.msra.mxu0 %v237
    %517 = vmatprep.subr.mxu0 0.0
    %518 = vmatpush1.msra.mxu0 %v238
    %519 = vmatprep.subr.mxu0 0.0
    %520 = vmatpush1.msra.mxu0 %v239
    %521 = vmatprep.subr.mxu0 0.0
    %522 = vmatpush1.msra.mxu0 %v240
    %523 = vmatprep.subr.mxu0 0.0
    %524 = vmatpush1.msra.mxu0 %v241
    %525 = vmatprep.subr.mxu0 0.0
    %526 = vmatpush1.msra.mxu0 %v242
    %527 = vmatprep.subr.mxu0 0.0
    %528 = vmatpush1.msra.mxu0 %v243
    %529 = vmatprep.subr.mxu0 0.0
    %530 = vmatpush1.msra.mxu0 %v244
    %531 = vmatprep.subr.mxu0 0.0
    %532 = vmatpush1.msra.mxu0 %v245
    %533 = vmatprep.subr.mxu0 0.0
    %534 = vmatpush1.msra.mxu0 %v246
    %535 = vmatprep.subr.mxu0 0.0
    %536 = vmatpush1.msra.mxu0 %v247
    %537 = vmatprep.subr.mxu0 0.0
    %538 = vmatpush1.msra.mxu0 %v248
    %539 = vmatprep.subr.mxu0 0.0
    %540 = vmatpush1.msra.mxu0 %v249
    %541 = vmatprep.subr.mxu0 0.0
    %542 = vmatpush1.msra.mxu0 %v250
    %543 = vmatprep.subr.mxu0 0.0
    %544 = vmatpush1.msra.mxu0 0.0
    %545 = vmatprep.subr.mxu0 0.0
    %546 = vmatpush1.msra.mxu0 0.0
    %547 = vmatprep.subr.mxu0 0.0
    %548 = vmatpush1.msra.mxu0 0.0
    %549 = vmatprep.subr.mxu0 0.0
    %550 = vmatpush1.msra.mxu0 0.0
    %551 = vmatprep.subr.mxu0 0.0
    %552 = vmatpush1.msra.mxu0 0.0
    %553 = vmatprep.subr.mxu0 0.0
    %554 = vmatpush1.msra.mxu0 0.0
    %555 = vmatprep.subr.mxu0 0.0
    %556 = vmatpush1.msra.mxu0 0.0
    %557 = vmatprep.subr.mxu0 0.0
    %558 = vmatpush1.msra.mxu0 0.0
    %559 = vmatprep.subr.mxu0 0.0
    %560 = vmatpush1.msra.mxu0 0.0
    %561 = vmatprep.subr.mxu0 0.0
    %562 = vmatpush1.msra.mxu0 0.0
    %563 = vmatprep.subr.mxu0 0.0
    %564 = vmatpush1.msra.mxu0 0.0
    %565 = vmatprep.subr.mxu0 0.0
    %566 = vmatpush1.msra.mxu0 0.0
    %567 = vmatprep.subr.mxu0 0.0
    %568 = vmatpush1.msra.mxu0 0.0
    %569 = vmatprep.subr.mxu0 0.0
    %570 = vmatpush1.msra.mxu0 0.0
    %571 = vmatprep.subr.mxu0 0.0
    %572 = vmatpush1.msra.mxu0 0.0
    %573 = vmatprep.subr.mxu0 0.0
    %574 = vmatpush1.msra.mxu0 0.0
    %575 = vmatprep.mubr.f32.mxu0 0.0
    %576 = vmatmul.mubr.f32.gmra.mrb[0].mxu0 %v502
    %v577 = vpop.f32.mrb[0].mxu0
    %v578 = vadd.f32 %v509, %v577
    %v579 = vpop.f32.mrb[0].mxu0
    %580 = vdwg.mxu0
    %v581 = vmax.f32 %v578, 0.0
    %v583 = vlaneseq
    %v584 = vshrl.u32 %v583, 7
    %v585 = vsub.s32 0, %v584
    %v586 = vrot.slane %v268, %v585
    %588 = vmatprep.subr.mxu0 0.0
    %589 = vmatpush1.msra.mxu0 %v252
    %590 = vmatprep.subr.mxu0 0.0
    %591 = vmatpush1.msra.mxu0 %v253
    %592 = vmatprep.subr.mxu0 0.0
    %593 = vmatpush1.msra.mxu0 %v254
    %594 = vmatprep.subr.mxu0 0.0
    %595 = vmatpush1.msra.mxu0 %v255
    %596 = vmatprep.subr.mxu0 0.0
    %597 = vmatpush1.msra.mxu0 %v256
    %598 = vmatprep.subr.mxu0 0.0
    %599 = vmatpush1.msra.mxu0 %v257
    %600 = vmatprep.subr.mxu0 0.0
    %601 = vmatpush1.msra.mxu0 %v258
    %602 = vmatprep.subr.mxu0 0.0
    %603 = vmatpush1.msra.mxu0 %v259
    %604 = vmatprep.subr.mxu0 0.0
    %605 = vmatpush1.msra.mxu0 %v260
    %606 = vmatprep.subr.mxu0 0.0
    %607 = vmatpush1.msra.mxu0 %v261
    %608 = vmatprep.subr.mxu0 0.0
    %609 = vmatpush1.msra.mxu0 %v262
    %610 = vmatprep.subr.mxu0 0.0
    %611 = vmatpush1.msra.mxu0 %v263
    %612 = vmatprep.subr.mxu0 0.0
    %613 = vmatpush1.msra.mxu0 %v264
    %614 = vmatprep.subr.mxu0 0.0
    %615 = vmatpush1.msra.mxu0 %v265
    %616 = vmatprep.subr.mxu0 0.0
    %617 = vmatpush1.msra.mxu0 %v266
    %618 = vmatprep.subr.mxu0 0.0
    %619 = vmatpush1.msra.mxu0 %v267
    %620 = vmatprep.subr.mxu0 0.0
    %621 = vmatpush1.msra.mxu0 0.0
    %622 = vmatprep.subr.mxu0 0.0
    %623 = vmatpush1.msra.mxu0 0.0
    %624 = vmatprep.subr.mxu0 0.0
    %625 = vmatpush1.msra.mxu0 0.0
    %626 = vmatprep.subr.mxu0 0.0
    %627 = vmatpush1.msra.mxu0 0.0
    %628 = vmatprep.subr.mxu0 0.0
    %629 = vmatpush1.msra.mxu0 0.0
    %630 = vmatprep.subr.mxu0 0.0
    %631 = vmatpush1.msra.mxu0 0.0
    %632 = vmatprep.subr.mxu0 0.0
    %633 = vmatpush1.msra.mxu0 0.0
    %634 = vmatprep.subr.mxu0 0.0
    %635 = vmatpush1.msra.mxu0 0.0
    %636 = vmatprep.subr.mxu0 0.0
    %637 = vmatpush1.msra.mxu0 0.0
    %638 = vmatprep.subr.mxu0 0.0
    %639 = vmatpush1.msra.mxu0 0.0
    %640 = vmatprep.subr.mxu0 0.0
    %641 = vmatpush1.msra.mxu0 0.0
    %642 = vmatprep.subr.mxu0 0.0
    %643 = vmatpush1.msra.mxu0 0.0
    %644 = vmatprep.subr.mxu0 0.0
    %645 = vmatpush1.msra.mxu0 0.0
    %646 = vmatprep.subr.mxu0 0.0
    %647 = vmatpush1.msra.mxu0 0.0
    %648 = vmatprep.subr.mxu0 0.0
    %649 = vmatpush1.msra.mxu0 0.0
    %650 = vmatprep.subr.mxu0 0.0
    %651 = vmatpush1.msra.mxu0 0.0
    %652 = vmatprep.mubr.f32.mxu0 0.0
    %653 = vmatmul.mubr.f32.gmra.mrb[0].mxu0 %v581
    %v654 = vpop.f32.mrb[0].mxu0
    %v655 = vadd.f32 %v586, %v654
    %v656 = vpop.f32.mrb[0].mxu0
    %657 = vdwg.mxu0
    %v659 = vlaneseq
    %v660 = vshrl.u32 %v659, 7
    %v661 = vsub.s32 0, %v660
    %v662 = vrot.slane %v301, %v661
    %v663 = vlaneseq
    %v664 = vshrl.u32 %v663, 7
    %v665 = vsub.s32 1, %v664
    %v666 = vrot.slane %v301, %v665
    %669 = vmatprep.subr.mxu0 %v270
    %670 = vmatpush1.msra.mxu0 %v269
    %671 = vmatprep.subr.mxu0 %v272
    %672 = vmatpush1.msra.mxu0 %v271
    %673 = vmatprep.subr.mxu0 %v274
    %674 = vmatpush1.msra.mxu0 %v273
    %675 = vmatprep.subr.mxu0 %v276
    %676 = vmatpush1.msra.mxu0 %v275
    %677 = vmatprep.subr.mxu0 %v278
    %678 = vmatpush1.msra.mxu0 %v277
    %679 = vmatprep.subr.mxu0 %v280
    %680 = vmatpush1.msra.mxu0 %v279
    %681 = vmatprep.subr.mxu0 %v282
    %682 = vmatpush1.msra.mxu0 %v281
    %683 = vmatprep.subr.mxu0 %v284
    %684 = vmatpush1.msra.mxu0 %v283
    %685 = vmatprep.subr.mxu0 %v286
    %686 = vmatpush1.msra.mxu0 %v285
    %687 = vmatprep.subr.mxu0 %v288
    %688 = vmatpush1.msra.mxu0 %v287
    %689 = vmatprep.subr.mxu0 %v290
    %690 = vmatpush1.msra.mxu0 %v289
    %691 = vmatprep.subr.mxu0 %v292
    %692 = vmatpush1.msra.mxu0 %v291
    %693 = vmatprep.subr.mxu0 %v294
    %694 = vmatpush1.msra.mxu0 %v293
    %695 = vmatprep.subr.mxu0 %v296
    %696 = vmatpush1.msra.mxu0 %v295
    %697 = vmatprep.subr.mxu0 %v298
    %698 = vmatpush1.msra.mxu0 %v297
    %699 = vmatprep.subr.mxu0 %v300
    %700 = vmatpush1.msra.mxu0 %v299
    %701 = vmatprep.subr.mxu0 0.0
    %702 = vmatpush1.msra.mxu0 0.0
    %703 = vmatprep.subr.mxu0 0.0
    %704 = vmatpush1.msra.mxu0 0.0
    %705 = vmatprep.subr.mxu0 0.0
    %706 = vmatpush1.msra.mxu0 0.0
    %707 = vmatprep.subr.mxu0 0.0
    %708 = vmatpush1.msra.mxu0 0.0
    %709 = vmatprep.subr.mxu0 0.0
    %710 = vmatpush1.msra.mxu0 0.0
    %711 = vmatprep.subr.mxu0 0.0
    %712 = vmatpush1.msra.mxu0 0.0
    %713 = vmatprep.subr.mxu0 0.0
    %714 = vmatpush1.msra.mxu0 0.0
    %715 = vmatprep.subr.mxu0 0.0
    %716 = vmatpush1.msra.mxu0 0.0
    %717 = vmatprep.subr.mxu0 0.0
    %718 = vmatpush1.msra.mxu0 0.0
    %719 = vmatprep.subr.mxu0 0.0
    %720 = vmatpush1.msra.mxu0 0.0
    %721 = vmatprep.subr.mxu0 0.0
    %722 = vmatpush1.msra.mxu0 0.0
    %723 = vmatprep.subr.mxu0 0.0
    %724 = vmatpush1.msra.mxu0 0.0
    %725 = vmatprep.subr.mxu0 0.0
    %726 = vmatpush1.msra.mxu0 0.0
    %727 = vmatprep.subr.mxu0 0.0
    %728 = vmatpush1.msra.mxu0 0.0
    %729 = vmatprep.subr.mxu0 0.0
    %730 = vmatpush1.msra.mxu0 0.0
    %731 = vmatprep.subr.mxu0 0.0
    %732 = vmatpush1.msra.mxu0 0.0
    %733 = vmatprep.mubr.f32.mxu0 0.0
    %734 = vmatmul.mubr.f32.gmra.mrb[0].mxu0 %v200
    %v735 = vpop.f32.mrb[0].mxu0
    %v736 = vadd.f32 %v662, %v735
    %v737 = vpop.f32.mrb[0].mxu0
    %v738 = vadd.f32 %v666, %v737
    %739 = vdwg.mxu0
    %v740 = vmax.f32 %v736, 0.0
    %v741 = vmax.f32 %v738, 0.0
    %v743 = vlaneseq
    %v744 = vshrl.u32 %v743, 7
    %v745 = vsub.s32 0, %v744
    %v746 = vrot.slane %v334, %v745
    %748 = vmatprep.subr.mxu0 0.0
    %749 = vmatpush1.msra.mxu0 %v302
    %750 = vmatprep.subr.mxu0 0.0
    %751 = vmatpush1.msra.mxu0 %v303
    %752 = vmatprep.subr.mxu0 0.0
    %753 = vmatpush1.msra.mxu0 %v304
    %754 = vmatprep.subr.mxu0 0.0
    %755 = vmatpush1.msra.mxu0 %v305
    %756 = vmatprep.subr.mxu0 0.0
    %757 = vmatpush1.msra.mxu0 %v306
    %758 = vmatprep.subr.mxu0 0.0
    %759 = vmatpush1.msra.mxu0 %v307
    %760 = vmatprep.subr.mxu0 0.0
    %761 = vmatpush1.msra.mxu0 %v308
    %762 = vmatprep.subr.mxu0 0.0
    %763 = vmatpush1.msra.mxu0 %v309
    %764 = vmatprep.subr.mxu0 0.0
    %765 = vmatpush1.msra.mxu0 %v310
    %766 = vmatprep.subr.mxu0 0.0
    %767 = vmatpush1.msra.mxu0 %v311
    %768 = vmatprep.subr.mxu0 0.0
    %769 = vmatpush1.msra.mxu0 %v312
    %770 = vmatprep.subr.mxu0 0.0
    %771 = vmatpush1.msra.mxu0 %v313
    %772 = vmatprep.subr.mxu0 0.0
    %773 = vmatpush1.msra.mxu0 %v314
    %774 = vmatprep.subr.mxu0 0.0
    %775 = vmatpush1.msra.mxu0 %v315
    %776 = vmatprep.subr.mxu0 0.0
    %777 = vmatpush1.msra.mxu0 %v316
    %778 = vmatprep.subr.mxu0 0.0
    %779 = vmatpush1.msra.mxu0 %v317
    %780 = vmatprep.subr.mxu0 0.0
    %781 = vmatpush1.msra.mxu0 %v318
    %782 = vmatprep.subr.mxu0 0.0
    %783 = vmatpush1.msra.mxu0 %v319
    %784 = vmatprep.subr.mxu0 0.0
    %785 = vmatpush1.msra.mxu0 %v320
    %786 = vmatprep.subr.mxu0 0.0
    %787 = vmatpush1.msra.mxu0 %v321
    %788 = vmatprep.subr.mxu0 0.0
    %789 = vmatpush1.msra.mxu0 %v322
    %790 = vmatprep.subr.mxu0 0.0
    %791 = vmatpush1.msra.mxu0 %v323
    %792 = vmatprep.subr.mxu0 0.0
    %793 = vmatpush1.msra.mxu0 %v324
    %794 = vmatprep.subr.mxu0 0.0
    %795 = vmatpush1.msra.mxu0 %v325
    %796 = vmatprep.subr.mxu0 0.0
    %797 = vmatpush1.msra.mxu0 %v326
    %798 = vmatprep.subr.mxu0 0.0
    %799 = vmatpush1.msra.mxu0 %v327
    %800 = vmatprep.subr.mxu0 0.0
    %801 = vmatpush1.msra.mxu0 %v328
    %802 = vmatprep.subr.mxu0 0.0
    %803 = vmatpush1.msra.mxu0 %v329
    %804 = vmatprep.subr.mxu0 0.0
    %805 = vmatpush1.msra.mxu0 %v330
    %806 = vmatprep.subr.mxu0 0.0
    %807 = vmatpush1.msra.mxu0 %v331
    %808 = vmatprep.subr.mxu0 0.0
    %809 = vmatpush1.msra.mxu0 %v332
    %810 = vmatprep.subr.mxu0 0.0
    %811 = vmatpush1.msra.mxu0 %v333
    %812 = vmatprep.mubr.f32.mxu0 %v741
    %813 = vmatmul.mubr.f32.gmra.mrb[0].mxu0 %v740
    %v814 = vpop.f32.mrb[0].mxu0
    %v815 = vadd.f32 %v746, %v814
    %v816 = vpop.f32.mrb[0].mxu0
    %817 = vdwg.mxu0
    %v818 = vmax.f32 %v815, 0.0
    %v820 = vlaneseq
    %v821 = vshrl.u32 %v820, 7
    %v822 = vsub.s32 0, %v821
    %v823 = vrot.slane %v351, %v822
    %825 = vmatprep.subr.mxu0 0.0
    %826 = vmatpush1.msra.mxu0 %v335
    %827 = vmatprep.subr.mxu0 0.0
    %828 = vmatpush1.msra.mxu0 %v336
    %829 = vmatprep.subr.mxu0 0.0
    %830 = vmatpush1.msra.mxu0 %v337
    %831 = vmatprep.subr.mxu0 0.0
    %832 = vmatpush1.msra.mxu0 %v338
    %833 = vmatprep.subr.mxu0 0.0
    %834 = vmatpush1.msra.mxu0 %v339
    %835 = vmatprep.subr.mxu0 0.0
    %836 = vmatpush1.msra.mxu0 %v340
    %837 = vmatprep.subr.mxu0 0.0
    %838 = vmatpush1.msra.mxu0 %v341
    %839 = vmatprep.subr.mxu0 0.0
    %840 = vmatpush1.msra.mxu0 %v342
    %841 = vmatprep.subr.mxu0 0.0
    %842 = vmatpush1.msra.mxu0 %v343
    %843 = vmatprep.subr.mxu0 0.0
    %844 = vmatpush1.msra.mxu0 %v344
    %845 = vmatprep.subr.mxu0 0.0
    %846 = vmatpush1.msra.mxu0 %v345
    %847 = vmatprep.subr.mxu0 0.0
    %848 = vmatpush1.msra.mxu0 %v346
    %849 = vmatprep.subr.mxu0 0.0
    %850 = vmatpush1.msra.mxu0 %v347
    %851 = vmatprep.subr.mxu0 0.0
    %852 = vmatpush1.msra.mxu0 %v348
    %853 = vmatprep.subr.mxu0 0.0
    %854 = vmatpush1.msra.mxu0 %v349
    %855 = vmatprep.subr.mxu0 0.0
    %856 = vmatpush1.msra.mxu0 %v350
    %857 = vmatprep.subr.mxu0 0.0
    %858 = vmatpush1.msra.mxu0 0.0
    %859 = vmatprep.subr.mxu0 0.0
    %860 = vmatpush1.msra.mxu0 0.0
    %861 = vmatprep.subr.mxu0 0.0
    %862 = vmatpush1.msra.mxu0 0.0
    %863 = vmatprep.subr.mxu0 0.0
    %864 = vmatpush1.msra.mxu0 0.0
    %865 = vmatprep.subr.mxu0 0.0
    %866 = vmatpush1.msra.mxu0 0.0
    %867 = vmatprep.subr.mxu0 0.0
    %868 = vmatpush1.msra.mxu0 0.0
    %869 = vmatprep.subr.mxu0 0.0
    %870 = vmatpush1.msra.mxu0 0.0
    %871 = vmatprep.subr.mxu0 0.0
    %872 = vmatpush1.msra.mxu0 0.0
    %873 = vmatprep.subr.mxu0 0.0
    %874 = vmatpush1.msra.mxu0 0.0
    %875 = vmatprep.subr.mxu0 0.0
    %876 = vmatpush1.msra.mxu0 0.0
    %877 = vmatprep.subr.mxu0 0.0
    %878 = vmatpush1.msra.mxu0 0.0
    %879 = vmatprep.subr.mxu0 0.0
    %880 = vmatpush1.msra.mxu0 0.0
    %881 = vmatprep.subr.mxu0 0.0
    %882 = vmatpush1.msra.mxu0 0.0
    %883 = vmatprep.subr.mxu0 0.0
    %884 = vmatpush1.msra.mxu0 0.0
    %885 = vmatprep.subr.mxu0 0.0
    %886 = vmatpush1.msra.mxu0 0.0
    %887 = vmatprep.subr.mxu0 0.0
    %888 = vmatpush1.msra.mxu0 0.0
    %889 = vmatprep.mubr.f32.mxu0 0.0
    %890 = vmatmul.mubr.f32.gmra.mrb[0].mxu0 %v818
    %v891 = vpop.f32.mrb[0].mxu0
    %v892 = vadd.f32 %v823, %v891
    %v893 = vpop.f32.mrb[0].mxu0
    %894 = vdwg.mxu0
    %895 = vst [vmem:[#allocation19] sm:$0xff] %v502
    %896 = vst [vmem:[#allocation20] sm:$0xff] %v655
    %897 = vst [vmem:[#allocation22] sm:$0xff] %v892
    %p898 = scmp.eq.s32.totalorder 0, 0
    // Predicated region
    $region114: #{tpu_custom_call.1} parent=1 // pred_check
      %p899 = pneg %p898
    $region115: #{tpu_custom_call.1} parent=1 // pred_check_branch
      %901 = sbr.rel (%p899) target = $region117
    $region116: #{tpu_custom_call.1} parent=1 // pred_region
      %v902 = vld [vmem:[#allocation5] sm:$0xff]
      %v903 = vld [vmem:[#allocation5 + $0x8] sm:$0x3]
      %vm904 = vcmask 1041408
      %v905 = vsel %vm904, %v903, 0.0
      %v906 = vadd.f32 %v902, %v905
      %v907 = vrot.slane %v906, 4
      %v908 = vadd.f32 %v906, %v907
      %v909 = vrot.slane %v908, 2
      %v910 = vadd.f32 %v908, %v909
      %v911 = vrot.slane %v910, 1
      %v912 = vadd.f32 %v910, %v911
      %v913 = vrcp.pop 10.0
      %v914 = vmul.f32 %v912, %v913
      %v915 = vld [vmem:[#allocation17] sm:$0xff]
      %v916 = vld [vmem:[#allocation17 + $0x8] sm:$0xff]
      %v917 = vld [vmem:[#allocation17 + $0x10] sm:$0xff]
      %v918 = vld [vmem:[#allocation17 + $0x18] sm:$0xff]
      %v919 = vld [vmem:[#allocation17 + $0x20] sm:$0xff]
      %v920 = vld [vmem:[#allocation17 + $0x28] sm:$0xff]
      %v921 = vld [vmem:[#allocation17 + $0x30] sm:$0xff]
      %v922 = vld [vmem:[#allocation17 + $0x38] sm:$0xff]
      %v923 = vld [vmem:[#allocation17 + $0x40] sm:$0xff]
      %v924 = vld [vmem:[#allocation17 + $0x48] sm:$0xff]
      %v925 = vld [vmem:[#allocation17 + $0x50] sm:$0xff]
      %v926 = vld [vmem:[#allocation17 + $0x58] sm:$0xff]
      %v927 = vld [vmem:[#allocation17 + $0x60] sm:$0xff]
      %v928 = vld [vmem:[#allocation17 + $0x68] sm:$0xff]
      %v929 = vld [vmem:[#allocation17 + $0x70] sm:$0xff]
      %v930 = vld [vmem:[#allocation17 + $0x78] sm:$0xff]
      %v931 = vld [vmem:[%s17] sm:$0x1]
      %932 = vmatprep.subr.mxu0 0.0
      %933 = vmatpush1.msra.mxu0 %v915
      %934 = vmatprep.subr.mxu0 0.0
      %935 = vmatpush1.msra.mxu0 %v916
      %936 = vmatprep.subr.mxu0 0.0
      %937 = vmatpush1.msra.mxu0 %v917
      %938 = vmatprep.subr.mxu0 0.0
      %939 = vmatpush1.msra.mxu0 %v918
      %940 = vmatprep.subr.mxu0 0.0
      %941 = vmatpush1.msra.mxu0 %v919
      %942 = vmatprep.subr.mxu0 0.0
      %943 = vmatpush1.msra.mxu0 %v920
      %944 = vmatprep.subr.mxu0 0.0
      %945 = vmatpush1.msra.mxu0 %v921
      %946 = vmatprep.subr.mxu0 0.0
      %947 = vmatpush1.msra.mxu0 %v922
      %948 = vmatprep.subr.mxu0 0.0
      %949 = vmatpush1.msra.mxu0 %v923
      %950 = vmatprep.subr.mxu0 0.0
      %951 = vmatpush1.msra.mxu0 %v924
      %952 = vmatprep.subr.mxu0 0.0
      %953 = vmatpush1.msra.mxu0 %v925
      %954 = vmatprep.subr.mxu0 0.0
      %955 = vmatpush1.msra.mxu0 %v926
      %956 = vmatprep.subr.mxu0 0.0
      %957 = vmatpush1.msra.mxu0 %v927
      %958 = vmatprep.subr.mxu0 0.0
      %959 = vmatpush1.msra.mxu0 %v928
      %960 = vmatprep.subr.mxu0 0.0
      %961 = vmatpush1.msra.mxu0 %v929
      %962 = vmatprep.subr.mxu0 0.0
      %963 = vmatpush1.msra.mxu0 %v930
      %964 = vmatprep.subr.mxu0 0.0
      %965 = vmatpush1.msra.mxu0 0.0
      %966 = vmatprep.subr.mxu0 0.0
      %967 = vmatpush1.msra.mxu0 0.0
      %968 = vmatprep.subr.mxu0 0.0
      %969 = vmatpush1.msra.mxu0 0.0
      %970 = vmatprep.subr.mxu0 0.0
      %971 = vmatpush1.msra.mxu0 0.0
      %972 = vmatprep.subr.mxu0 0.0
      %973 = vmatpush1.msra.mxu0 0.0
      %974 = vmatprep.subr.mxu0 0.0
      %975 = vmatpush1.msra.mxu0 0.0
      %976 = vmatprep.subr.mxu0 0.0
      %977 = vmatpush1.msra.mxu0 0.0
      %978 = vmatprep.subr.mxu0 0.0
      %979 = vmatpush1.msra.mxu0 0.0
      %980 = vmatprep.subr.mxu0 0.0
      %981 = vmatpush1.msra.mxu0 0.0
      %982 = vmatprep.subr.mxu0 0.0
      %983 = vmatpush1.msra.mxu0 0.0
      %984 = vmatprep.subr.mxu0 0.0
      %985 = vmatpush1.msra.mxu0 0.0
      %986 = vmatprep.subr.mxu0 0.0
      %987 = vmatpush1.msra.mxu0 0.0
      %988 = vmatprep.subr.mxu0 0.0
      %989 = vmatpush1.msra.mxu0 0.0
      %990 = vmatprep.subr.mxu0 0.0
      %991 = vmatpush1.msra.mxu0 0.0
      %992 = vmatprep.subr.mxu0 0.0
      %993 = vmatpush1.msra.mxu0 0.0
      %994 = vmatprep.subr.mxu0 0.0
      %995 = vmatpush1.msra.mxu0 0.0
      %996 = vmatprep.mubr.f32.mxu0 0.0
      %997 = vmatmul.mubr.f32.gmra.mrb[0].mxu0 %v914
      %v998 = vpop.f32.mrb[0].mxu0
      %v999 = vadd.f32 %v931, %v998
      %v1000 = vpop.f32.mrb[0].mxu0
      %1001 = vdwg.mxu0
      %1002 = vst [vmem:[#allocation23] sm:$0x1] %v999
    $region117: #{tpu_custom_call.1} parent=1 // pred_fallthru
      _
    // Predicated region
    $region118: #{tpu_custom_call.1} parent=1 // pred_check
      _
    $region119: #{tpu_custom_call.1} parent=1 // pred_check_branch
      %1004 = sbr.rel (0) target = $region121
    $region120: #{tpu_custom_call.1} parent=1 // pred_region
      %s1006 = ssub.s32 128, 128
      %1007 = vsyncadd [#allocation4], %s1006
      %s1009 = sshll.u32 [#allocation19], 4
      %s1010 = int_to_ptr.vmem [resolvable:$true] %s1009
      %1012 = dma.vmem_to_hbm [thread:$0]  %s1010, 128, %s18, [#allocation4]
    $region121: #{tpu_custom_call.1} parent=1 // pred_fallthru
      _
    // Predicated region
    $region122: #{tpu_custom_call.1} parent=1 // pred_check
      _
    $region123: #{tpu_custom_call.1} parent=1 // pred_check_branch
      %1014 = sbr.rel (0) target = $region125
    $region124: #{tpu_custom_call.1} parent=1 // pred_region
      %s1016 = ssub.s32 128, 128
      %1017 = vsyncadd [#allocation21], %s1016
      %s1019 = sshll.u32 [#allocation20], 4
      %s1020 = int_to_ptr.vmem [resolvable:$true] %s1019
      %1022 = dma.vmem_to_hbm [thread:$0]  %s1020, 128, %s19, [#allocation21]
    $region125: #{tpu_custom_call.1} parent=1 // pred_fallthru
      _
    // Predicated region
    $region126: #{tpu_custom_call.1} parent=1 // pred_check
      _
    $region127: #{tpu_custom_call.1} parent=1 // pred_check_branch
      %1024 = sbr.rel (0) target = $region129
    $region128: #{tpu_custom_call.1} parent=1 // pred_region
      %s1026 = ssub.s32 128, 128
      %1027 = vsyncadd [#allocation21], %s1026
      %s1029 = sshll.u32 [#allocation22], 4
      %s1030 = int_to_ptr.vmem [resolvable:$true] %s1029
      %1032 = dma.vmem_to_hbm [thread:$0]  %s1030, 128, %s20, [#allocation21]
    $region129: #{tpu_custom_call.1} parent=1 // pred_fallthru
      _
    // Predicated region
    $region130: #{tpu_custom_call.1} parent=1 // pred_check
      _
    $region131: #{tpu_custom_call.1} parent=1 // pred_check_branch
      %1034 = sbr.rel (0) target = $region133
    $region132: #{tpu_custom_call.1} parent=1 // pred_region
      %s1036 = ssub.s32 16, 16
      %1037 = vsyncadd [#allocation24], %s1036
      %s1039 = sshll.u32 [#allocation23], 4
      %s1040 = int_to_ptr.vmem [resolvable:$true] %s1039
      %1042 = dma.vmem_to_hbm [thread:$0]  %s1040, 16, %s21, [#allocation24]
    $region133: #{tpu_custom_call.1} parent=1 // pred_fallthru
      _
    // Predicated region
    $region134: #{tpu_custom_call.1} parent=1 // pred_check
      _
    $region135: #{tpu_custom_call.1} parent=1 // pred_check_branch
      %1044 = sbr.rel (0) target = $region137
    $region136: #{tpu_custom_call.1} parent=1 // pred_region
      %1045 = dma.done [#allocation4], 128
    $region137: #{tpu_custom_call.1} parent=1 // pred_fallthru
      _
    // Predicated region
    $region138: #{tpu_custom_call.1} parent=1 // pred_check
      _
    $region139: #{tpu_custom_call.1} parent=1 // pred_check_branch
      %1047 = sbr.rel (0) target = $region141
    $region140: #{tpu_custom_call.1} parent=1 // pred_region
      %1048 = dma.done [#allocation21], 128
    $region141: #{tpu_custom_call.1} parent=1 // pred_fallthru
      _
    // Predicated region
    $region142: #{tpu_custom_call.1} parent=1 // pred_check
      _
    $region143: #{tpu_custom_call.1} parent=1 // pred_check_branch
      %1050 = sbr.rel (0) target = $region145
    $region144: #{tpu_custom_call.1} parent=1 // pred_region
      %1051 = dma.done [#allocation21], 128
    $region145: #{tpu_custom_call.1} parent=1 // pred_fallthru
      _
    // Predicated region
    $region146: #{tpu_custom_call.1} parent=1 // pred_check
      _
    $region147: #{tpu_custom_call.1} parent=1 // pred_check_branch
      %1053 = sbr.rel (0) target = $region149
    $region148: #{tpu_custom_call.1} parent=1 // pred_region
      %1054 = dma.done [#allocation24], 16
    $region149: #{tpu_custom_call.1} parent=1 // pred_fallthru
      _
    %1055 = vsyncpa [#allocation3], 1
    %1056 = vsyncpa [#allocation6], 1
    %1057 = vsyncpa [#allocation9], 1
    %1058 = vsyncpa [#allocation12], 1
    %1059 = vsyncpa [#allocation15], 1
    %1060 = vsyncpa [#allocation18], 1
    %1061 = vsyncpa [#allocation4], 1
    %1062 = vsyncpa [#allocation21], 1
    %1063 = vsyncpa [#allocation24], 1

</llo_original>
